<compile_context>
chip_gen: v7x
topology: tpu7x:2x2x1
jax: 0.10.0
libtpu: 0.0.40
codegen_flags: <defaults>
</compile_context>

<pallas_src>
import functools

import jax
import jax.numpy as jnp
import numpy as np
from jax import lax
from jax.experimental import pallas as pl
from jax.experimental.pallas import tpu as pltpu

ORGANS_INDEX = (1, 3, 4, 5, 6, 7, 11, 14)
NUM_ORGAN = len(ORGANS_INDEX)
NUM_CLASS = NUM_ORGAN + 1          # pred has 9 channels
_LANE = 128


def _lane_fold(x):
    """Sum 128-lane chunks of the last axis with plain vector adds -> (..., 128).

    Defers the expensive cross-lane (XLU) reduction to the tiny JAX epilogue; per-tile
    work is pure VPU adds on lane-aligned vreg slices (pairwise tree for ILP/accuracy).
    """
    n = x.shape[-1]
    parts = [x[..., j * _LANE:(j + 1) * _LANE] for j in range(n // _LANE)]
    while len(parts) > 1:
        nxt = [parts[k] + parts[k + 1] for k in range(0, len(parts) - 1, 2)]
        if len(parts) % 2:
            nxt.append(parts[-1])
        parts = nxt
    return parts[0]


def _focal_dice_kernel(p1_ref, p2_ref, tgt_ref,
                       inter1_ref, psum1_ref, focal1_ref,
                       inter2_ref, psum2_ref, focal2_ref,
                       tsum_ref):
    @pl.when(pl.program_id(1) == 0)
    def _init():
        for r in (inter1_ref, psum1_ref, focal1_ref,
                  inter2_ref, psum2_ref, focal2_ref, tsum_ref):
            r[...] = jnp.zeros_like(r)

    tgt = tgt_ref[...]                                         # (B, TN) int32

    # Per-channel label tables, built once at a tiny (1, 9, 1) shape (constant-folded):
    #   dice: channel c (1..8) <-> label ORGANS_INDEX[c-1]; channel 0 never matches.
    #   ce:   channel c (0..7) <-> label ORGANS_INDEX[c]   ; channel 8 never matches.
    ch = lax.broadcasted_iota(jnp.int32, (1, NUM_CLASS, 1), 1)
    lab_dice = jnp.full((1, NUM_CLASS, 1), -1, jnp.int32)
    lab_ce = jnp.full((1, NUM_CLASS, 1), -1, jnp.int32)
    for idx, organ in enumerate(ORGANS_INDEX):
        lab_dice = jnp.where(ch == idx + 1, organ, lab_dice)
        lab_ce = jnp.where(ch == idx, organ, lab_ce)

    tgt_b = tgt[:, None, :]                                    # (B, 1, TN)
    oh_dice = (tgt_b == lab_dice).astype(jnp.float32)          # (B, 9, TN) organ one-hot
    oh_ce = (tgt_b == lab_ce).astype(jnp.float32)              # (B, 9, TN) remapped CE class

    # Target-only dice denominator term: shared by both stages, accumulated once per tile.
    tsum_ref[...] += _lane_fold(oh_dice)                       # (B, 9, 128); channel 0 == 0

    for pred_ref, inter_ref, psum_ref, focal_ref in (
            (p1_ref, inter1_ref, psum1_ref, focal1_ref),
            (p2_ref, inter2_ref, psum2_ref, focal2_ref)):
        pred = pred_ref[...].astype(jnp.float32)               # (B, 9, TN)

        # ---- dice partial sums (channel 0 unused, dropped in the epilogue) ----
        pc = jnp.minimum(pred, 0.9)                            # == 0.9 - relu(0.9 - x)
        psum_ref[...] += _lane_fold(pc)
        inter_ref[...] += _lane_fold(pc * oh_dice)

        # ---- focal: CE(pred, remapped target) * (1 - max softmax)^2 ----
        m = jnp.max(pred, axis=1, keepdims=True)               # (B, 1, TN)
        s = jnp.sum(jnp.exp(pred - m), axis=1, keepdims=True)  # (B, 1, TN)
        pred0 = pred[:, 0:1, :]
        # pred[class]: organ voxels pick their (shifted) channel, background picks channel 0.
        p_sel = pred0 + jnp.sum((pred - pred0) * oh_ce, axis=1, keepdims=True)
        ce = (m + jnp.log(s)) - p_sel                          # logsumexp - pred[class]
        w = (1.0 - 1.0 / s) ** 2                               # max softmax prob == 1/s
        focal_ref[...] += _lane_fold(ce * w)                   # (B, 1, 128)


def _pick_tile_n(n, max_tile_n, bytes_per_col, vmem_budget_bytes):
    """Largest multiple of 128 that divides n, <= max_tile_n and the VMEM budget."""
    cap = min(max_tile_n, n, max(_LANE, vmem_budget_bytes // max(bytes_per_col, 1)))
    t = max(_LANE, cap - cap % _LANE)
    while n % t:
        t -= _LANE
    return t


@functools.partial(jax.jit, static_argnames=("max_tile_n",))
def focal_dice_loss(pred_stage1, pred_stage2, target, *, max_tile_n=8192):
    """Matches FocalDiceLoss.forward: _loss(pred_stage1, target) + _loss(pred_stage2, target)."""
    b, c, d, h, w = pred_stage1.shape
    assert c == NUM_CLASS and pred_stage2.shape == pred_stage1.shape
    n = d * h * w
    # TODO(synk): pad/mask support for spatial sizes not divisible by 128 (the module's
    # fixed 48*256*256 volume is divisible).
    assert n % _LANE == 0, "flattened spatial size must be a multiple of 128"

    p1 = pred_stage1.reshape(b, c, n)            # no dtype cast: feed bf16/f32 straight in
    p2 = pred_stage2.reshape(b, c, n)
    tgt = target.reshape(b, n)
    if tgt.dtype != jnp.int32:
        tgt = tgt.astype(jnp.int32)

    # Double-buffered input bytes per unit of tile_n (both stages + target), used to cap
    # the tile so everything fits comfortably under a 32 MiB scoped VMEM limit.
    pred_itemsize = np.dtype(pred_stage1.dtype).itemsize
    bytes_per_col = 2 * 2 * b * NUM_CLASS * pred_itemsize + 2 * b * 4
    tile_n = _pick_tile_n(n, max_tile_n, bytes_per_col, 12 * 1024 * 1024)
    n_tiles = n // tile_n
    split = 2 if n_tiles % 2 == 0 else 1         # 2-way "parallel" axis -> both TCs on v7x
    n_per = n_tiles // split

    dice_shape = jax.ShapeDtypeStruct((split, b, NUM_CLASS, _LANE), jnp.float32)
    focal_shape = jax.ShapeDtypeStruct((split, b, 1, _LANE), jnp.float32)
    dice_spec = pl.BlockSpec((None, b, NUM_CLASS, _LANE), lambda p, i: (p, 0, 0, 0))
    focal_spec = pl.BlockSpec((None, b, 1, _LANE), lambda p, i: (p, 0, 0, 0))

    outs = pl.pallas_call(
        _focal_dice_kernel,
        out_shape=(dice_shape, dice_shape, focal_shape,    # stage 1: inter, psum, focal
                   dice_shape, dice_shape, focal_shape,    # stage 2: inter, psum, focal
                   dice_shape),                            # tsum (shared by both stages)
        grid=(split, n_per),
        in_specs=[
            pl.BlockSpec((b, NUM_CLASS, tile_n), lambda p, i: (0, 0, p * n_per + i)),
            pl.BlockSpec((b, NUM_CLASS, tile_n), lambda p, i: (0, 0, p * n_per + i)),
            pl.BlockSpec((b, tile_n), lambda p, i: (0, p * n_per + i)),
        ],
        out_specs=(dice_spec, dice_spec, focal_spec,
                   dice_spec, dice_spec, focal_spec,
                   dice_spec),
        compiler_params=pltpu.CompilerParams(
            dimension_semantics=("parallel", "arbitrary"),
            vmem_limit_bytes=32 * 1024 * 1024,
        ),
    )(p1, p2, tgt)
    inter1, psum1, focal1, inter2, psum2, focal2, tsum = outs

    # ---- tiny JAX epilogue on (split, B, 9, 128)-sized partials ----
    tsum_s = jnp.sum(tsum, axis=(0, -1))[:, 1:]                # (B, 8)

    def _stage(inter, psum, focal):
        inter_s = jnp.sum(inter, axis=(0, -1))[:, 1:]          # (B, 8)
        psum_s = jnp.sum(psum, axis=(0, -1))[:, 1:]
        dice = 2.0 * (inter_s + 1e-6) / (psum_s + tsum_s + 1e-6)
        dice_mean = jnp.mean(jnp.sum(1.0 - dice, axis=-1) / NUM_ORGAN)
        focal_mean = jnp.sum(focal) / float(b * n)
        return dice_mean + focal_mean

    return _stage(inter1, psum1, focal1) + _stage(inter2, psum2, focal2)


# ---------------- pure-JAX reference (for correctness check) ----------------
def _ref_stage_loss(pred, target):
    pred = pred.astype(jnp.float32)
    organs = jnp.stack([(target == oi).astype(jnp.float32) for oi in ORGANS_INDEX], axis=1)
    new_tgt = jnp.argmax(organs, axis=1)
    dice_loss_sum = 0.0
    for idx in range(1, NUM_ORGAN + 1):
        p = jnp.minimum(pred[:, idx], 0.9)
        t = organs[:, idx - 1]
        dice = 2.0 * (jnp.sum(p * t, axis=(1, 2, 3)) + 1e-6) / (
            jnp.sum(p, axis=(1, 2, 3)) + jnp.sum(t, axis=(1, 2, 3)) + 1e-6)
        dice_loss_sum = dice_loss_sum + (1.0 - dice)
    dice_mean = jnp.mean(dice_loss_sum / NUM_ORGAN)
    log_sm = jax.nn.log_softmax(pred, axis=1)
    ce = -jnp.take_along_axis(log_sm, new_tgt[:, None], axis=1)[:, 0]
    expo = (1.0 - jnp.max(jax.nn.softmax(pred, axis=1), axis=1)) ** 2
    return dice_mean + jnp.mean(ce * expo)


if __name__ == "__main__":
    key = jax.random.PRNGKey(0)
    k1, k2, k3 = jax.random.split(key, 3)
    # Small shapes consistent with the module: pred (B, 9, D, H, W), target (B, D, H, W).
    B, C, D, H, W = 2, NUM_CLASS, 4, 16, 64          # N = 4096
    pred1 = jax.random.normal(k1, (B, C, D, H, W), dtype=jnp.float32)
    pred2 = jax.random.normal(k2, (B, C, D, H, W), dtype=jnp.float32)
    target = jax.random.randint(k3, (B, D, H, W), 0, 16, dtype=jnp.int32)

    ref = _ref_stage_loss(pred1, target) + _ref_stage_loss(pred2, target)

    # max_tile_n=512 -> 8 tiles -> grid (2, 4): exercises the parallel split and the
    # cross-tile accumulation path.
    loss_tiled = focal_dice_loss(pred1, pred2, target, max_tile_n=512)
    jax.block_until_ready(loss_tiled)
    np.testing.assert_allclose(np.asarray(loss_tiled), np.asarray(ref), rtol=2e-4, atol=2e-5)

    # Default (large-tile) path: single tile here, grid (1, 1).
    loss_big = focal_dice_loss(pred1, pred2, target)
    jax.block_until_ready(loss_big)
    np.testing.assert_allclose(np.asarray(loss_big), np.asarray(ref), rtol=2e-4, atol=2e-5)

    print("KERNEL_OK")
</pallas_src>

<mosaic_0001>
module attributes {stable_mosaic.version = 11 : i64} {
  func.func @_focal_dice_kernel(%arg0: i32, %arg1: i32, %arg2: memref<2x9x512xf32, #tpu.memory_space<vmem>>, %arg3: memref<2x9x512xf32, #tpu.memory_space<vmem>>, %arg4: memref<2x512xi32, #tpu.memory_space<vmem>>, %arg5: memref<1x2x9x128xf32, #tpu.memory_space<vmem>>, %arg6: memref<1x2x9x128xf32, #tpu.memory_space<vmem>>, %arg7: memref<1x2x1x128xf32, #tpu.memory_space<vmem>>, %arg8: memref<1x2x9x128xf32, #tpu.memory_space<vmem>>, %arg9: memref<1x2x9x128xf32, #tpu.memory_space<vmem>>, %arg10: memref<1x2x1x128xf32, #tpu.memory_space<vmem>>, %arg11: memref<1x2x9x128xf32, #tpu.memory_space<vmem>>) attributes {dimension_semantics = [#tpu.dimension_semantics<parallel>, #tpu.dimension_semantics<arbitrary>], iteration_bounds = array<i64: 2, 4>, scalar_prefetch = 0 : i64, scratch_operands = 0 : i64, tpu.core_type = #tpu.core_type<tc>, window_params = [{transform_indices = @transform_0, window_bounds = array<i64: 2, 9, 512>}, {transform_indices = @transform_1, window_bounds = array<i64: 2, 9, 512>}, {transform_indices = @transform_2, window_bounds = array<i64: 2, 512>}, {transform_indices = @transform_3, window_bounds = array<i64: 1, 2, 9, 128>}, {transform_indices = @transform_4, window_bounds = array<i64: 1, 2, 9, 128>}, {transform_indices = @transform_5, window_bounds = array<i64: 1, 2, 1, 128>}, {transform_indices = @transform_6, window_bounds = array<i64: 1, 2, 9, 128>}, {transform_indices = @transform_7, window_bounds = array<i64: 1, 2, 9, 128>}, {transform_indices = @transform_8, window_bounds = array<i64: 1, 2, 1, 128>}, {transform_indices = @transform_9, window_bounds = array<i64: 1, 2, 9, 128>}]} {
    %c0_i32 = arith.constant 0 : i32
    %0 = arith.cmpi eq, %arg1, %c0_i32 : i32
    %1 = arith.extui %0 : i1 to i32
    %c0_i32_0 = arith.constant 0 : i32
    %2 = arith.cmpi ne, %1, %c0_i32_0 : i32
    scf.if %2 {
      %cst_98 = arith.constant 0.000000e+00 : f32
      %227 = vector.broadcast %cst_98 : f32 to vector<2x9x128xf32>
      %c0_99 = arith.constant 0 : index
      %c0_100 = arith.constant 0 : index
      %c0_101 = arith.constant 0 : index
      %c0_102 = arith.constant 0 : index
      %228 = vector.load %arg5[%c0_99, %c0_100, %c0_101, %c0_102] : memref<1x2x9x128xf32, #tpu.memory_space<vmem>>, vector<1x2x9x128xf32>
      %229 = vector.shape_cast %228 : vector<1x2x9x128xf32> to vector<2x9x128xf32>
      %230 = vector.shape_cast %227 : vector<2x9x128xf32> to vector<1x2x9x128xf32>
      tpu.vector_store %arg5[%c0_99, %c0_100, %c0_101, %c0_102], %230 {strides = array<i32>} : memref<1x2x9x128xf32, #tpu.memory_space<vmem>>, vector<1x2x9x128xf32>,
      %cst_103 = arith.constant 0.000000e+00 : f32
      %231 = vector.broadcast %cst_103 : f32 to vector<2x9x128xf32>
      %c0_104 = arith.constant 0 : index
      %c0_105 = arith.constant 0 : index
      %c0_106 = arith.constant 0 : index
      %c0_107 = arith.constant 0 : index
      %232 = vector.load %arg6[%c0_104, %c0_105, %c0_106, %c0_107] : memref<1x2x9x128xf32, #tpu.memory_space<vmem>>, vector<1x2x9x128xf32>
      %233 = vector.shape_cast %232 : vector<1x2x9x128xf32> to vector<2x9x128xf32>
      %234 = vector.shape_cast %231 : vector<2x9x128xf32> to vector<1x2x9x128xf32>
      tpu.vector_store %arg6[%c0_104, %c0_105, %c0_106, %c0_107], %234 {strides = array<i32>} : memref<1x2x9x128xf32, #tpu.memory_space<vmem>>, vector<1x2x9x128xf32>,
      %cst_108 = arith.constant 0.000000e+00 : f32
      %235 = vector.broadcast %cst_108 : f32 to vector<2x1x128xf32>
      %c0_109 = arith.constant 0 : index
      %c0_110 = arith.constant 0 : index
      %c0_111 = arith.constant 0 : index
      %c0_112 = arith.constant 0 : index
      %236 = vector.load %arg7[%c0_109, %c0_110, %c0_111, %c0_112] : memref<1x2x1x128xf32, #tpu.memory_space<vmem>>, vector<1x2x1x128xf32>
      %237 = vector.shape_cast %236 : vector<1x2x1x128xf32> to vector<2x1x128xf32>
      %238 = vector.shape_cast %235 : vector<2x1x128xf32> to vector<1x2x1x128xf32>
      tpu.vector_store %arg7[%c0_109, %c0_110, %c0_111, %c0_112], %238 {strides = array<i32>} : memref<1x2x1x128xf32, #tpu.memory_space<vmem>>, vector<1x2x1x128xf32>,
      %cst_113 = arith.constant 0.000000e+00 : f32
      %239 = vector.broadcast %cst_113 : f32 to vector<2x9x128xf32>
      %c0_114 = arith.constant 0 : index
      %c0_115 = arith.constant 0 : index
      %c0_116 = arith.constant 0 : index
      %c0_117 = arith.constant 0 : index
      %240 = vector.load %arg8[%c0_114, %c0_115, %c0_116, %c0_117] : memref<1x2x9x128xf32, #tpu.memory_space<vmem>>, vector<1x2x9x128xf32>
      %241 = vector.shape_cast %240 : vector<1x2x9x128xf32> to vector<2x9x128xf32>
      %242 = vector.shape_cast %239 : vector<2x9x128xf32> to vector<1x2x9x128xf32>
      tpu.vector_store %arg8[%c0_114, %c0_115, %c0_116, %c0_117], %242 {strides = array<i32>} : memref<1x2x9x128xf32, #tpu.memory_space<vmem>>, vector<1x2x9x128xf32>,
      %cst_118 = arith.constant 0.000000e+00 : f32
      %243 = vector.broadcast %cst_118 : f32 to vector<2x9x128xf32>
      %c0_119 = arith.constant 0 : index
      %c0_120 = arith.constant 0 : index
      %c0_121 = arith.constant 0 : index
      %c0_122 = arith.constant 0 : index
      %244 = vector.load %arg9[%c0_119, %c0_120, %c0_121, %c0_122] : memref<1x2x9x128xf32, #tpu.memory_space<vmem>>, vector<1x2x9x128xf32>
      %245 = vector.shape_cast %244 : vector<1x2x9x128xf32> to vector<2x9x128xf32>
      %246 = vector.shape_cast %243 : vector<2x9x128xf32> to vector<1x2x9x128xf32>
      tpu.vector_store %arg9[%c0_119, %c0_120, %c0_121, %c0_122], %246 {strides = array<i32>} : memref<1x2x9x128xf32, #tpu.memory_space<vmem>>, vector<1x2x9x128xf32>,
      %cst_123 = arith.constant 0.000000e+00 : f32
      %247 = vector.broadcast %cst_123 : f32 to vector<2x1x128xf32>
      %c0_124 = arith.constant 0 : index
      %c0_125 = arith.constant 0 : index
      %c0_126 = arith.constant 0 : index
      %c0_127 = arith.constant 0 : index
      %248 = vector.load %arg10[%c0_124, %c0_125, %c0_126, %c0_127] : memref<1x2x1x128xf32, #tpu.memory_space<vmem>>, vector<1x2x1x128xf32>
      %249 = vector.shape_cast %248 : vector<1x2x1x128xf32> to vector<2x1x128xf32>
      %250 = vector.shape_cast %247 : vector<2x1x128xf32> to vector<1x2x1x128xf32>
      tpu.vector_store %arg10[%c0_124, %c0_125, %c0_126, %c0_127], %250 {strides = array<i32>} : memref<1x2x1x128xf32, #tpu.memory_space<vmem>>, vector<1x2x1x128xf32>,
      %cst_128 = arith.constant 0.000000e+00 : f32
      %251 = vector.broadcast %cst_128 : f32 to vector<2x9x128xf32>
      %c0_129 = arith.constant 0 : index
      %c0_130 = arith.constant 0 : index
      %c0_131 = arith.constant 0 : index
      %c0_132 = arith.constant 0 : index
      %252 = vector.load %arg11[%c0_129, %c0_130, %c0_131, %c0_132] : memref<1x2x9x128xf32, #tpu.memory_space<vmem>>, vector<1x2x9x128xf32>
      %253 = vector.shape_cast %252 : vector<1x2x9x128xf32> to vector<2x9x128xf32>
      %254 = vector.shape_cast %251 : vector<2x9x128xf32> to vector<1x2x9x128xf32>
      tpu.vector_store %arg11[%c0_129, %c0_130, %c0_131, %c0_132], %254 {strides = array<i32>} : memref<1x2x9x128xf32, #tpu.memory_space<vmem>>, vector<1x2x9x128xf32>,
    } else {
    }
    %c0 = arith.constant 0 : index
    %c0_1 = arith.constant 0 : index
    %3 = vector.load %arg4[%c0, %c0_1] : memref<2x512xi32, #tpu.memory_space<vmem>>, vector<2x512xi32>
    %4 = tpu.iota {dimensions = array<i32: 1>} : vector<1x9x1xi32>
    %c-1_i32 = arith.constant -1 : i32
    %5 = vector.broadcast %c-1_i32 : i32 to vector<1x9x1xi32>
    %c-1_i32_2 = arith.constant -1 : i32
    %6 = vector.broadcast %c-1_i32_2 : i32 to vector<1x9x1xi32>
    %c1_i32 = arith.constant 1 : i32
    %7 = vector.broadcast %c1_i32 : i32 to vector<1x9x1xi32>
    %8 = arith.cmpi eq, %4, %7 : vector<1x9x1xi32>
    %c1_i32_3 = arith.constant 1 : i32
    %9 = vector.broadcast %c1_i32_3 : i32 to vector<1x9x1xi32>
    %10 = arith.select %8, %9, %5 : vector<1x9x1xi1>, vector<1x9x1xi32>
    %c0_i32_4 = arith.constant 0 : i32
    %11 = vector.broadcast %c0_i32_4 : i32 to vector<1x9x1xi32>
    %12 = arith.cmpi eq, %4, %11 : vector<1x9x1xi32>
    %c1_i32_5 = arith.constant 1 : i32
    %13 = vector.broadcast %c1_i32_5 : i32 to vector<1x9x1xi32>
    %14 = arith.select %12, %13, %6 : vector<1x9x1xi1>, vector<1x9x1xi32>
    %c2_i32 = arith.constant 2 : i32
    %15 = vector.broadcast %c2_i32 : i32 to vector<1x9x1xi32>
    %16 = arith.cmpi eq, %4, %15 : vector<1x9x1xi32>
    %c3_i32 = arith.constant 3 : i32
    %17 = vector.broadcast %c3_i32 : i32 to vector<1x9x1xi32>
    %18 = arith.select %16, %17, %10 : vector<1x9x1xi1>, vector<1x9x1xi32>
    %c1_i32_6 = arith.constant 1 : i32
    %19 = vector.broadcast %c1_i32_6 : i32 to vector<1x9x1xi32>
    %20 = arith.cmpi eq, %4, %19 : vector<1x9x1xi32>
    %c3_i32_7 = arith.constant 3 : i32
    %21 = vector.broadcast %c3_i32_7 : i32 to vector<1x9x1xi32>
    %22 = arith.select %20, %21, %14 : vector<1x9x1xi1>, vector<1x9x1xi32>
    %c3_i32_8 = arith.constant 3 : i32
    %23 = vector.broadcast %c3_i32_8 : i32 to vector<1x9x1xi32>
    %24 = arith.cmpi eq, %4, %23 : vector<1x9x1xi32>
    %c4_i32 = arith.constant 4 : i32
    %25 = vector.broadcast %c4_i32 : i32 to vector<1x9x1xi32>
    %26 = arith.select %24, %25, %18 : vector<1x9x1xi1>, vector<1x9x1xi32>
    %c2_i32_9 = arith.constant 2 : i32
    %27 = vector.broadcast %c2_i32_9 : i32 to vector<1x9x1xi32>
    %28 = arith.cmpi eq, %4, %27 : vector<1x9x1xi32>
    %c4_i32_10 = arith.constant 4 : i32
    %29 = vector.broadcast %c4_i32_10 : i32 to vector<1x9x1xi32>
    %30 = arith.select %28, %29, %22 : vector<1x9x1xi1>, vector<1x9x1xi32>
    %c4_i32_11 = arith.constant 4 : i32
    %31 = vector.broadcast %c4_i32_11 : i32 to vector<1x9x1xi32>
    %32 = arith.cmpi eq, %4, %31 : vector<1x9x1xi32>
    %c5_i32 = arith.constant 5 : i32
    %33 = vector.broadcast %c5_i32 : i32 to vector<1x9x1xi32>
    %34 = arith.select %32, %33, %26 : vector<1x9x1xi1>, vector<1x9x1xi32>
    %c3_i32_12 = arith.constant 3 : i32
    %35 = vector.broadcast %c3_i32_12 : i32 to vector<1x9x1xi32>
    %36 = arith.cmpi eq, %4, %35 : vector<1x9x1xi32>
    %c5_i32_13 = arith.constant 5 : i32
    %37 = vector.broadcast %c5_i32_13 : i32 to vector<1x9x1xi32>
    %38 = arith.select %36, %37, %30 : vector<1x9x1xi1>, vector<1x9x1xi32>
    %c5_i32_14 = arith.constant 5 : i32
    %39 = vector.broadcast %c5_i32_14 : i32 to vector<1x9x1xi32>
    %40 = arith.cmpi eq, %4, %39 : vector<1x9x1xi32>
    %c6_i32 = arith.constant 6 : i32
    %41 = vector.broadcast %c6_i32 : i32 to vector<1x9x1xi32>
    %42 = arith.select %40, %41, %34 : vector<1x9x1xi1>, vector<1x9x1xi32>
    %c4_i32_15 = arith.constant 4 : i32
    %43 = vector.broadcast %c4_i32_15 : i32 to vector<1x9x1xi32>
    %44 = arith.cmpi eq, %4, %43 : vector<1x9x1xi32>
    %c6_i32_16 = arith.constant 6 : i32
    %45 = vector.broadcast %c6_i32_16 : i32 to vector<1x9x1xi32>
    %46 = arith.select %44, %45, %38 : vector<1x9x1xi1>, vector<1x9x1xi32>
    %c6_i32_17 = arith.constant 6 : i32
    %47 = vector.broadcast %c6_i32_17 : i32 to vector<1x9x1xi32>
    %48 = arith.cmpi eq, %4, %47 : vector<1x9x1xi32>
    %c7_i32 = arith.constant 7 : i32
    %49 = vector.broadcast %c7_i32 : i32 to vector<1x9x1xi32>
    %50 = arith.select %48, %49, %42 : vector<1x9x1xi1>, vector<1x9x1xi32>
    %c5_i32_18 = arith.constant 5 : i32
    %51 = vector.broadcast %c5_i32_18 : i32 to vector<1x9x1xi32>
    %52 = arith.cmpi eq, %4, %51 : vector<1x9x1xi32>
    %c7_i32_19 = arith.constant 7 : i32
    %53 = vector.broadcast %c7_i32_19 : i32 to vector<1x9x1xi32>
    %54 = arith.select %52, %53, %46 : vector<1x9x1xi1>, vector<1x9x1xi32>
    %c7_i32_20 = arith.constant 7 : i32
    %55 = vector.broadcast %c7_i32_20 : i32 to vector<1x9x1xi32>
    %56 = arith.cmpi eq, %4, %55 : vector<1x9x1xi32>
    %c11_i32 = arith.constant 11 : i32
    %57 = vector.broadcast %c11_i32 : i32 to vector<1x9x1xi32>
    %58 = arith.select %56, %57, %50 : vector<1x9x1xi1>, vector<1x9x1xi32>
    %c6_i32_21 = arith.constant 6 : i32
    %59 = vector.broadcast %c6_i32_21 : i32 to vector<1x9x1xi32>
    %60 = arith.cmpi eq, %4, %59 : vector<1x9x1xi32>
    %c11_i32_22 = arith.constant 11 : i32
    %61 = vector.broadcast %c11_i32_22 : i32 to vector<1x9x1xi32>
    %62 = arith.select %60, %61, %54 : vector<1x9x1xi1>, vector<1x9x1xi32>
    %c8_i32 = arith.constant 8 : i32
    %63 = vector.broadcast %c8_i32 : i32 to vector<1x9x1xi32>
    %64 = arith.cmpi eq, %4, %63 : vector<1x9x1xi32>
    %c14_i32 = arith.constant 14 : i32
    %65 = vector.broadcast %c14_i32 : i32 to vector<1x9x1xi32>
    %66 = arith.select %64, %65, %58 : vector<1x9x1xi1>, vector<1x9x1xi32>
    %c7_i32_23 = arith.constant 7 : i32
    %67 = vector.broadcast %c7_i32_23 : i32 to vector<1x9x1xi32>
    %68 = arith.cmpi eq, %4, %67 : vector<1x9x1xi32>
    %c14_i32_24 = arith.constant 14 : i32
    %69 = vector.broadcast %c14_i32_24 : i32 to vector<1x9x1xi32>
    %70 = arith.select %68, %69, %62 : vector<1x9x1xi1>, vector<1x9x1xi32>
    %71 = vector.shape_cast %3 : vector<2x512xi32> to vector<2x1x512xi32>
    %72 = vector.broadcast %71 : vector<2x1x512xi32> to vector<2x9x512xi32>
    %73 = vector.broadcast %66 : vector<1x9x1xi32> to vector<2x9x512xi32>
    %74 = arith.cmpi eq, %72, %73 : vector<2x9x512xi32>
    %75 = arith.extui %74 : vector<2x9x512xi1> to vector<2x9x512xi32>
    %76 = arith.sitofp %75 : vector<2x9x512xi32> to vector<2x9x512xf32>
    %77 = vector.broadcast %71 : vector<2x1x512xi32> to vector<2x9x512xi32>
    %78 = vector.broadcast %70 : vector<1x9x1xi32> to vector<2x9x512xi32>
    %79 = arith.cmpi eq, %77, %78 : vector<2x9x512xi32>
    %80 = arith.extui %79 : vector<2x9x512xi1> to vector<2x9x512xi32>
    %81 = arith.sitofp %80 : vector<2x9x512xi32> to vector<2x9x512xf32>
    %c0_25 = arith.constant 0 : index
    %c0_26 = arith.constant 0 : index
    %c0_27 = arith.constant 0 : index
    %c0_28 = arith.constant 0 : index
    %82 = vector.load %arg11[%c0_25, %c0_26, %c0_27, %c0_28] : memref<1x2x9x128xf32, #tpu.memory_space<vmem>>, vector<1x2x9x128xf32>
    %83 = vector.shape_cast %82 : vector<1x2x9x128xf32> to vector<2x9x128xf32>
    %84 = vector.extract_strided_slice %76 {offsets = [0, 0, 0], sizes = [2, 9, 128], strides = [1, 1, 1]} : vector<2x9x512xf32> to vector<2x9x128xf32>
    %85 = vector.extract_strided_slice %76 {offsets = [0, 0, 128], sizes = [2, 9, 128], strides = [1, 1, 1]} : vector<2x9x512xf32> to vector<2x9x128xf32>
    %86 = vector.extract_strided_slice %76 {offsets = [0, 0, 256], sizes = [2, 9, 128], strides = [1, 1, 1]} : vector<2x9x512xf32> to vector<2x9x128xf32>
    %87 = vector.extract_strided_slice %76 {offsets = [0, 0, 384], sizes = [2, 9, 128], strides = [1, 1, 1]} : vector<2x9x512xf32> to vector<2x9x128xf32>
    %88 = arith.addf %84, %85 : vector<2x9x128xf32>
    %89 = arith.addf %86, %87 : vector<2x9x128xf32>
    %90 = arith.addf %88, %89 : vector<2x9x128xf32>
    %91 = arith.addf %83, %90 : vector<2x9x128xf32>
    %c0_29 = arith.constant 0 : index
    %c0_30 = arith.constant 0 : index
    %c0_31 = arith.constant 0 : index
    %c0_32 = arith.constant 0 : index
    %92 = vector.load %arg11[%c0_29, %c0_30, %c0_31, %c0_32] : memref<1x2x9x128xf32, #tpu.memory_space<vmem>>, vector<1x2x9x128xf32>
    %93 = vector.shape_cast %92 : vector<1x2x9x128xf32> to vector<2x9x128xf32>
    %94 = vector.shape_cast %91 : vector<2x9x128xf32> to vector<1x2x9x128xf32>
    tpu.vector_store %arg11[%c0_29, %c0_30, %c0_31, %c0_32], %94 {strides = array<i32>} : memref<1x2x9x128xf32, #tpu.memory_space<vmem>>, vector<1x2x9x128xf32>,
    %c0_33 = arith.constant 0 : index
    %c0_34 = arith.constant 0 : index
    %c0_35 = arith.constant 0 : index
    %95 = vector.load %arg2[%c0_33, %c0_34, %c0_35] : memref<2x9x512xf32, #tpu.memory_space<vmem>>, vector<2x9x512xf32>
    %cst = arith.constant 0.899999976 : f32
    %96 = vector.broadcast %cst : f32 to vector<2x9x512xf32>
    %97 = arith.minimumf %95, %96 : vector<2x9x512xf32>
    %c0_36 = arith.constant 0 : index
    %c0_37 = arith.constant 0 : index
    %c0_38 = arith.constant 0 : index
    %c0_39 = arith.constant 0 : index
    %98 = vector.load %arg6[%c0_36, %c0_37, %c0_38, %c0_39] : memref<1x2x9x128xf32, #tpu.memory_space<vmem>>, vector<1x2x9x128xf32>
    %99 = vector.shape_cast %98 : vector<1x2x9x128xf32> to vector<2x9x128xf32>
    %100 = vector.extract_strided_slice %97 {offsets = [0, 0, 0], sizes = [2, 9, 128], strides = [1, 1, 1]} : vector<2x9x512xf32> to vector<2x9x128xf32>
    %101 = vector.extract_strided_slice %97 {offsets = [0, 0, 128], sizes = [2, 9, 128], strides = [1, 1, 1]} : vector<2x9x512xf32> to vector<2x9x128xf32>
    %102 = vector.extract_strided_slice %97 {offsets = [0, 0, 256], sizes = [2, 9, 128], strides = [1, 1, 1]} : vector<2x9x512xf32> to vector<2x9x128xf32>
    %103 = vector.extract_strided_slice %97 {offsets = [0, 0, 384], sizes = [2, 9, 128], strides = [1, 1, 1]} : vector<2x9x512xf32> to vector<2x9x128xf32>
    %104 = arith.addf %100, %101 : vector<2x9x128xf32>
    %105 = arith.addf %102, %103 : vector<2x9x128xf32>
    %106 = arith.addf %104, %105 : vector<2x9x128xf32>
    %107 = arith.addf %99, %106 : vector<2x9x128xf32>
    %c0_40 = arith.constant 0 : index
    %c0_41 = arith.constant 0 : index
    %c0_42 = arith.constant 0 : index
    %c0_43 = arith.constant 0 : index
    %108 = vector.load %arg6[%c0_40, %c0_41, %c0_42, %c0_43] : memref<1x2x9x128xf32, #tpu.memory_space<vmem>>, vector<1x2x9x128xf32>
    %109 = vector.shape_cast %108 : vector<1x2x9x128xf32> to vector<2x9x128xf32>
    %110 = vector.shape_cast %107 : vector<2x9x128xf32> to vector<1x2x9x128xf32>
    tpu.vector_store %arg6[%c0_40, %c0_41, %c0_42, %c0_43], %110 {strides = array<i32>} : memref<1x2x9x128xf32, #tpu.memory_space<vmem>>, vector<1x2x9x128xf32>,
    %c0_44 = arith.constant 0 : index
    %c0_45 = arith.constant 0 : index
    %c0_46 = arith.constant 0 : index
    %c0_47 = arith.constant 0 : index
    %111 = vector.load %arg5[%c0_44, %c0_45, %c0_46, %c0_47] : memref<1x2x9x128xf32, #tpu.memory_space<vmem>>, vector<1x2x9x128xf32>
    %112 = vector.shape_cast %111 : vector<1x2x9x128xf32> to vector<2x9x128xf32>
    %113 = arith.mulf %97, %76 : vector<2x9x512xf32>
    %114 = vector.extract_strided_slice %113 {offsets = [0, 0, 0], sizes = [2, 9, 128], strides = [1, 1, 1]} : vector<2x9x512xf32> to vector<2x9x128xf32>
    %115 = vector.extract_strided_slice %113 {offsets = [0, 0, 128], sizes = [2, 9, 128], strides = [1, 1, 1]} : vector<2x9x512xf32> to vector<2x9x128xf32>
    %116 = vector.extract_strided_slice %113 {offsets = [0, 0, 256], sizes = [2, 9, 128], strides = [1, 1, 1]} : vector<2x9x512xf32> to vector<2x9x128xf32>
    %117 = vector.extract_strided_slice %113 {offsets = [0, 0, 384], sizes = [2, 9, 128], strides = [1, 1, 1]} : vector<2x9x512xf32> to vector<2x9x128xf32>
    %118 = arith.addf %114, %115 : vector<2x9x128xf32>
    %119 = arith.addf %116, %117 : vector<2x9x128xf32>
    %120 = arith.addf %118, %119 : vector<2x9x128xf32>
    %121 = arith.addf %112, %120 : vector<2x9x128xf32>
    %c0_48 = arith.constant 0 : index
    %c0_49 = arith.constant 0 : index
    %c0_50 = arith.constant 0 : index
    %c0_51 = arith.constant 0 : index
    %122 = vector.load %arg5[%c0_48, %c0_49, %c0_50, %c0_51] : memref<1x2x9x128xf32, #tpu.memory_space<vmem>>, vector<1x2x9x128xf32>
    %123 = vector.shape_cast %122 : vector<1x2x9x128xf32> to vector<2x9x128xf32>
    %124 = vector.shape_cast %121 : vector<2x9x128xf32> to vector<1x2x9x128xf32>
    tpu.vector_store %arg5[%c0_48, %c0_49, %c0_50, %c0_51], %124 {strides = array<i32>} : memref<1x2x9x128xf32, #tpu.memory_space<vmem>>, vector<1x2x9x128xf32>,
    %cst_52 = arith.constant dense<0xFF800000> : vector<2x512xf32>
    %125 = vector.multi_reduction <maximumf>, %95, %cst_52 [1] : vector<2x9x512xf32> to vector<2x512xf32>
    %126 = vector.shape_cast %125 : vector<2x512xf32> to vector<2x1x512xf32>
    %127 = vector.broadcast %126 : vector<2x1x512xf32> to vector<2x9x512xf32>
    %128 = arith.subf %95, %127 : vector<2x9x512xf32>
    %129 = math.exp %128 : vector<2x9x512xf32>
    %cst_53 = arith.constant dense<0.000000e+00> : vector<2x512xf32>
    %130 = vector.multi_reduction <add>, %129, %cst_53 [1] : vector<2x9x512xf32> to vector<2x512xf32>
    %131 = vector.shape_cast %130 : vector<2x512xf32> to vector<2x1x512xf32>
    %132 = vector.extract_strided_slice %95 {offsets = [0, 0, 0], sizes = [2, 1, 512], strides = [1, 1, 1]} : vector<2x9x512xf32> to vector<2x1x512xf32>
    %133 = vector.broadcast %132 : vector<2x1x512xf32> to vector<2x9x512xf32>
    %134 = arith.subf %95, %133 : vector<2x9x512xf32>
    %135 = arith.mulf %134, %81 : vector<2x9x512xf32>
    %cst_54 = arith.constant dense<0.000000e+00> : vector<2x512xf32>
    %136 = vector.multi_reduction <add>, %135, %cst_54 [1] : vector<2x9x512xf32> to vector<2x512xf32>
    %137 = vector.shape_cast %136 : vector<2x512xf32> to vector<2x1x512xf32>
    %138 = arith.addf %132, %137 : vector<2x1x512xf32>
    %139 = math.log %131 : vector<2x1x512xf32>
    %140 = arith.addf %126, %139 : vector<2x1x512xf32>
    %141 = arith.subf %140, %138 : vector<2x1x512xf32>
    %cst_55 = arith.constant 1.000000e+00 : f32
    %142 = vector.broadcast %cst_55 : f32 to vector<2x1x512xf32>
    %143 = arith.divf %142, %131 : vector<2x1x512xf32>
    %cst_56 = arith.constant 1.000000e+00 : f32
    %144 = vector.broadcast %cst_56 : f32 to vector<2x1x512xf32>
    %145 = arith.subf %144, %143 : vector<2x1x512xf32>
    %146 = arith.mulf %145, %145 : vector<2x1x512xf32>
    %c0_57 = arith.constant 0 : index
    %c0_58 = arith.constant 0 : index
    %c0_59 = arith.constant 0 : index
    %c0_60 = arith.constant 0 : index
    %147 = vector.load %arg7[%c0_57, %c0_58, %c0_59, %c0_60] : memref<1x2x1x128xf32, #tpu.memory_space<vmem>>, vector<1x2x1x128xf32>
    %148 = vector.shape_cast %147 : vector<1x2x1x128xf32> to vector<2x1x128xf32>
    %149 = arith.mulf %141, %146 : vector<2x1x512xf32>
    %150 = vector.extract_strided_slice %149 {offsets = [0, 0, 0], sizes = [2, 1, 128], strides = [1, 1, 1]} : vector<2x1x512xf32> to vector<2x1x128xf32>
    %151 = vector.extract_strided_slice %149 {offsets = [0, 0, 128], sizes = [2, 1, 128], strides = [1, 1, 1]} : vector<2x1x512xf32> to vector<2x1x128xf32>
    %152 = vector.extract_strided_slice %149 {offsets = [0, 0, 256], sizes = [2, 1, 128], strides = [1, 1, 1]} : vector<2x1x512xf32> to vector<2x1x128xf32>
    %153 = vector.extract_strided_slice %149 {offsets = [0, 0, 384], sizes = [2, 1, 128], strides = [1, 1, 1]} : vector<2x1x512xf32> to vector<2x1x128xf32>
    %154 = arith.addf %150, %151 : vector<2x1x128xf32>
    %155 = arith.addf %152, %153 : vector<2x1x128xf32>
    %156 = arith.addf %154, %155 : vector<2x1x128xf32>
    %157 = arith.addf %148, %156 : vector<2x1x128xf32>
    %c0_61 = arith.constant 0 : index
    %c0_62 = arith.constant 0 : index
    %c0_63 = arith.constant 0 : index
    %c0_64 = arith.constant 0 : index
    %158 = vector.load %arg7[%c0_61, %c0_62, %c0_63, %c0_64] : memref<1x2x1x128xf32, #tpu.memory_space<vmem>>, vector<1x2x1x128xf32>
    %159 = vector.shape_cast %158 : vector<1x2x1x128xf32> to vector<2x1x128xf32>
    %160 = vector.shape_cast %157 : vector<2x1x128xf32> to vector<1x2x1x128xf32>
    tpu.vector_store %arg7[%c0_61, %c0_62, %c0_63, %c0_64], %160 {strides = array<i32>} : memref<1x2x1x128xf32, #tpu.memory_space<vmem>>, vector<1x2x1x128xf32>,
    %c0_65 = arith.constant 0 : index
    %c0_66 = arith.constant 0 : index
    %c0_67 = arith.constant 0 : index
    %161 = vector.load %arg3[%c0_65, %c0_66, %c0_67] : memref<2x9x512xf32, #tpu.memory_space<vmem>>, vector<2x9x512xf32>
    %cst_68 = arith.constant 0.899999976 : f32
    %162 = vector.broadcast %cst_68 : f32 to vector<2x9x512xf32>
    %163 = arith.minimumf %161, %162 : vector<2x9x512xf32>
    %c0_69 = arith.constant 0 : index
    %c0_70 = arith.constant 0 : index
    %c0_71 = arith.constant 0 : index
    %c0_72 = arith.constant 0 : index
    %164 = vector.load %arg9[%c0_69, %c0_70, %c0_71, %c0_72] : memref<1x2x9x128xf32, #tpu.memory_space<vmem>>, vector<1x2x9x128xf32>
    %165 = vector.shape_cast %164 : vector<1x2x9x128xf32> to vector<2x9x128xf32>
    %166 = vector.extract_strided_slice %163 {offsets = [0, 0, 0], sizes = [2, 9, 128], strides = [1, 1, 1]} : vector<2x9x512xf32> to vector<2x9x128xf32>
    %167 = vector.extract_strided_slice %163 {offsets = [0, 0, 128], sizes = [2, 9, 128], strides = [1, 1, 1]} : vector<2x9x512xf32> to vector<2x9x128xf32>
    %168 = vector.extract_strided_slice %163 {offsets = [0, 0, 256], sizes = [2, 9, 128], strides = [1, 1, 1]} : vector<2x9x512xf32> to vector<2x9x128xf32>
    %169 = vector.extract_strided_slice %163 {offsets = [0, 0, 384], sizes = [2, 9, 128], strides = [1, 1, 1]} : vector<2x9x512xf32> to vector<2x9x128xf32>
    %170 = arith.addf %166, %167 : vector<2x9x128xf32>
    %171 = arith.addf %168, %169 : vector<2x9x128xf32>
    %172 = arith.addf %170, %171 : vector<2x9x128xf32>
    %173 = arith.addf %165, %172 : vector<2x9x128xf32>
    %c0_73 = arith.constant 0 : index
    %c0_74 = arith.constant 0 : index
    %c0_75 = arith.constant 0 : index
    %c0_76 = arith.constant 0 : index
    %174 = vector.load %arg9[%c0_73, %c0_74, %c0_75, %c0_76] : memref<1x2x9x128xf32, #tpu.memory_space<vmem>>, vector<1x2x9x128xf32>
    %175 = vector.shape_cast %174 : vector<1x2x9x128xf32> to vector<2x9x128xf32>
    %176 = vector.shape_cast %173 : vector<2x9x128xf32> to vector<1x2x9x128xf32>
    tpu.vector_store %arg9[%c0_73, %c0_74, %c0_75, %c0_76], %176 {strides = array<i32>} : memref<1x2x9x128xf32, #tpu.memory_space<vmem>>, vector<1x2x9x128xf32>,
    %c0_77 = arith.constant 0 : index
    %c0_78 = arith.constant 0 : index
    %c0_79 = arith.constant 0 : index
    %c0_80 = arith.constant 0 : index
    %177 = vector.load %arg8[%c0_77, %c0_78, %c0_79, %c0_80] : memref<1x2x9x128xf32, #tpu.memory_space<vmem>>, vector<1x2x9x128xf32>
    %178 = vector.shape_cast %177 : vector<1x2x9x128xf32> to vector<2x9x128xf32>
    %179 = arith.mulf %163, %76 : vector<2x9x512xf32>
    %180 = vector.extract_strided_slice %179 {offsets = [0, 0, 0], sizes = [2, 9, 128], strides = [1, 1, 1]} : vector<2x9x512xf32> to vector<2x9x128xf32>
    %181 = vector.extract_strided_slice %179 {offsets = [0, 0, 128], sizes = [2, 9, 128], strides = [1, 1, 1]} : vector<2x9x512xf32> to vector<2x9x128xf32>
    %182 = vector.extract_strided_slice %179 {offsets = [0, 0, 256], sizes = [2, 9, 128], strides = [1, 1, 1]} : vector<2x9x512xf32> to vector<2x9x128xf32>
    %183 = vector.extract_strided_slice %179 {offsets = [0, 0, 384], sizes = [2, 9, 128], strides = [1, 1, 1]} : vector<2x9x512xf32> to vector<2x9x128xf32>
    %184 = arith.addf %180, %181 : vector<2x9x128xf32>
    %185 = arith.addf %182, %183 : vector<2x9x128xf32>
    %186 = arith.addf %184, %185 : vector<2x9x128xf32>
    %187 = arith.addf %178, %186 : vector<2x9x128xf32>
    %c0_81 = arith.constant 0 : index
    %c0_82 = arith.constant 0 : index
    %c0_83 = arith.constant 0 : index
    %c0_84 = arith.constant 0 : index
    %188 = vector.load %arg8[%c0_81, %c0_82, %c0_83, %c0_84] : memref<1x2x9x128xf32, #tpu.memory_space<vmem>>, vector<1x2x9x128xf32>
    %189 = vector.shape_cast %188 : vector<1x2x9x128xf32> to vector<2x9x128xf32>
    %190 = vector.shape_cast %187 : vector<2x9x128xf32> to vector<1x2x9x128xf32>
    tpu.vector_store %arg8[%c0_81, %c0_82, %c0_83, %c0_84], %190 {strides = array<i32>} : memref<1x2x9x128xf32, #tpu.memory_space<vmem>>, vector<1x2x9x128xf32>,
    %cst_85 = arith.constant dense<0xFF800000> : vector<2x512xf32>
    %191 = vector.multi_reduction <maximumf>, %161, %cst_85 [1] : vector<2x9x512xf32> to vector<2x512xf32>
    %192 = vector.shape_cast %191 : vector<2x512xf32> to vector<2x1x512xf32>
    %193 = vector.broadcast %192 : vector<2x1x512xf32> to vector<2x9x512xf32>
    %194 = arith.subf %161, %193 : vector<2x9x512xf32>
    %195 = math.exp %194 : vector<2x9x512xf32>
    %cst_86 = arith.constant dense<0.000000e+00> : vector<2x512xf32>
    %196 = vector.multi_reduction <add>, %195, %cst_86 [1] : vector<2x9x512xf32> to vector<2x512xf32>
    %197 = vector.shape_cast %196 : vector<2x512xf32> to vector<2x1x512xf32>
    %198 = vector.extract_strided_slice %161 {offsets = [0, 0, 0], sizes = [2, 1, 512], strides = [1, 1, 1]} : vector<2x9x512xf32> to vector<2x1x512xf32>
    %199 = vector.broadcast %198 : vector<2x1x512xf32> to vector<2x9x512xf32>
    %200 = arith.subf %161, %199 : vector<2x9x512xf32>
    %201 = arith.mulf %200, %81 : vector<2x9x512xf32>
    %cst_87 = arith.constant dense<0.000000e+00> : vector<2x512xf32>
    %202 = vector.multi_reduction <add>, %201, %cst_87 [1] : vector<2x9x512xf32> to vector<2x512xf32>
    %203 = vector.shape_cast %202 : vector<2x512xf32> to vector<2x1x512xf32>
    %204 = arith.addf %198, %203 : vector<2x1x512xf32>
    %205 = math.log %197 : vector<2x1x512xf32>
    %206 = arith.addf %192, %205 : vector<2x1x512xf32>
    %207 = arith.subf %206, %204 : vector<2x1x512xf32>
    %cst_88 = arith.constant 1.000000e+00 : f32
    %208 = vector.broadcast %cst_88 : f32 to vector<2x1x512xf32>
    %209 = arith.divf %208, %197 : vector<2x1x512xf32>
    %cst_89 = arith.constant 1.000000e+00 : f32
    %210 = vector.broadcast %cst_89 : f32 to vector<2x1x512xf32>
    %211 = arith.subf %210, %209 : vector<2x1x512xf32>
    %212 = arith.mulf %211, %211 : vector<2x1x512xf32>
    %c0_90 = arith.constant 0 : index
    %c0_91 = arith.constant 0 : index
    %c0_92 = arith.constant 0 : index
    %c0_93 = arith.constant 0 : index
    %213 = vector.load %arg10[%c0_90, %c0_91, %c0_92, %c0_93] : memref<1x2x1x128xf32, #tpu.memory_space<vmem>>, vector<1x2x1x128xf32>
    %214 = vector.shape_cast %213 : vector<1x2x1x128xf32> to vector<2x1x128xf32>
    %215 = arith.mulf %207, %212 : vector<2x1x512xf32>
    %216 = vector.extract_strided_slice %215 {offsets = [0, 0, 0], sizes = [2, 1, 128], strides = [1, 1, 1]} : vector<2x1x512xf32> to vector<2x1x128xf32>
    %217 = vector.extract_strided_slice %215 {offsets = [0, 0, 128], sizes = [2, 1, 128], strides = [1, 1, 1]} : vector<2x1x512xf32> to vector<2x1x128xf32>
    %218 = vector.extract_strided_slice %215 {offsets = [0, 0, 256], sizes = [2, 1, 128], strides = [1, 1, 1]} : vector<2x1x512xf32> to vector<2x1x128xf32>
    %219 = vector.extract_strided_slice %215 {offsets = [0, 0, 384], sizes = [2, 1, 128], strides = [1, 1, 1]} : vector<2x1x512xf32> to vector<2x1x128xf32>
    %220 = arith.addf %216, %217 : vector<2x1x128xf32>
    %221 = arith.addf %218, %219 : vector<2x1x128xf32>
    %222 = arith.addf %220, %221 : vector<2x1x128xf32>
    %223 = arith.addf %214, %222 : vector<2x1x128xf32>
    %c0_94 = arith.constant 0 : index
    %c0_95 = arith.constant 0 : index
    %c0_96 = arith.constant 0 : index
    %c0_97 = arith.constant 0 : index
    %224 = vector.load %arg10[%c0_94, %c0_95, %c0_96, %c0_97] : memref<1x2x1x128xf32, #tpu.memory_space<vmem>>, vector<1x2x1x128xf32>
    %225 = vector.shape_cast %224 : vector<1x2x1x128xf32> to vector<2x1x128xf32>
    %226 = vector.shape_cast %223 : vector<2x1x128xf32> to vector<1x2x1x128xf32>
    tpu.vector_store %arg10[%c0_94, %c0_95, %c0_96, %c0_97], %226 {strides = array<i32>} : memref<1x2x1x128xf32, #tpu.memory_space<vmem>>, vector<1x2x1x128xf32>,
    return
  }
  func.func @transform_0(%arg0: i32, %arg1: i32) -> (i32, i32, i32) {
    %c4_i32 = arith.constant 4 : i32
    %0 = arith.muli %arg0, %c4_i32 : i32
    %1 = arith.addi %0, %arg1 : i32
    %c0_i32 = arith.constant 0 : i32
    %c0_i32_0 = arith.constant 0 : i32
    %c0_i32_1 = arith.constant 0 : i32
    return %c0_i32, %c0_i32_0, %1 : i32, i32, i32
  }
  func.func @transform_1(%arg0: i32, %arg1: i32) -> (i32, i32, i32) {
    %c4_i32 = arith.constant 4 : i32
    %0 = arith.muli %arg0, %c4_i32 : i32
    %1 = arith.addi %0, %arg1 : i32
    %c0_i32 = arith.constant 0 : i32
    %c0_i32_0 = arith.constant 0 : i32
    %c0_i32_1 = arith.constant 0 : i32
    return %c0_i32, %c0_i32_0, %1 : i32, i32, i32
  }
  func.func @transform_2(%arg0: i32, %arg1: i32) -> (i32, i32) {
    %c4_i32 = arith.constant 4 : i32
    %0 = arith.muli %arg0, %c4_i32 : i32
    %1 = arith.addi %0, %arg1 : i32
    %c0_i32 = arith.constant 0 : i32
    %c0_i32_0 = arith.constant 0 : i32
    return %c0_i32, %1 : i32, i32
  }
  func.func @transform_3(%arg0: i32, %arg1: i32) -> (i32, i32, i32, i32) {
    %c0_i32 = arith.constant 0 : i32
    %c0_i32_0 = arith.constant 0 : i32
    %c0_i32_1 = arith.constant 0 : i32
    %c0_i32_2 = arith.constant 0 : i32
    return %arg0, %c0_i32, %c0_i32_0, %c0_i32_1 : i32, i32, i32, i32
  }
  func.func @transform_4(%arg0: i32, %arg1: i32) -> (i32, i32, i32, i32) {
    %c0_i32 = arith.constant 0 : i32
    %c0_i32_0 = arith.constant 0 : i32
    %c0_i32_1 = arith.constant 0 : i32
    %c0_i32_2 = arith.constant 0 : i32
    return %arg0, %c0_i32, %c0_i32_0, %c0_i32_1 : i32, i32, i32, i32
  }
  func.func @transform_5(%arg0: i32, %arg1: i32) -> (i32, i32, i32, i32) {
    %c0_i32 = arith.constant 0 : i32
    %c0_i32_0 = arith.constant 0 : i32
    %c0_i32_1 = arith.constant 0 : i32
    %c0_i32_2 = arith.constant 0 : i32
    return %arg0, %c0_i32, %c0_i32_0, %c0_i32_1 : i32, i32, i32, i32
  }
  func.func @transform_6(%arg0: i32, %arg1: i32) -> (i32, i32, i32, i32) {
    %c0_i32 = arith.constant 0 : i32
    %c0_i32_0 = arith.constant 0 : i32
    %c0_i32_1 = arith.constant 0 : i32
    %c0_i32_2 = arith.constant 0 : i32
    return %arg0, %c0_i32, %c0_i32_0, %c0_i32_1 : i32, i32, i32, i32
  }
  func.func @transform_7(%arg0: i32, %arg1: i32) -> (i32, i32, i32, i32) {
    %c0_i32 = arith.constant 0 : i32
    %c0_i32_0 = arith.constant 0 : i32
    %c0_i32_1 = arith.constant 0 : i32
    %c0_i32_2 = arith.constant 0 : i32
    return %arg0, %c0_i32, %c0_i32_0, %c0_i32_1 : i32, i32, i32, i32
  }
  func.func @transform_8(%arg0: i32, %arg1: i32) -> (i32, i32, i32, i32) {
    %c0_i32 = arith.constant 0 : i32
    %c0_i32_0 = arith.constant 0 : i32
    %c0_i32_1 = arith.constant 0 : i32
    %c0_i32_2 = arith.constant 0 : i32
    return %arg0, %c0_i32, %c0_i32_0, %c0_i32_1 : i32, i32, i32, i32
  }
  func.func @transform_9(%arg0: i32, %arg1: i32) -> (i32, i32, i32, i32) {
    %c0_i32 = arith.constant 0 : i32
    %c0_i32_0 = arith.constant 0 : i32
    %c0_i32_1 = arith.constant 0 : i32
    %c0_i32_2 = arith.constant 0 : i32
    return %arg0, %c0_i32, %c0_i32_0, %c0_i32_1 : i32, i32, i32, i32
  }
}

</mosaic_0001>

<llo_original>
// kernel: focal_dice_loss.1
$region0: #{focal_dice_loss.1}
  #allocation0 [shape = 'u32[]', space=smem, size = 0x4, offset = 0x4, fixed_abs, tag = 'smem constant byte address 0x4 - core index']
  #allocation1 [shape = 'u32[144,128]{1,0:T(1,128)}', space=vmem, size = 0x12000, scoped, tag = 'internal scratch']
  %s0 = inlined_call_operand.vmem [shape: f32[2,9,4096], index: 0, kind: input, shape index: {}]
  %s1 = inlined_call_operand.vmem [shape: f32[2,9,4096], index: 1, kind: input, shape index: {}]
  %s2 = inlined_call_operand.vmem [shape: s32[2,4096], index: 2, kind: input, shape index: {}]
  %s3 = inlined_call_operand.vmem [shape: f32[2,2,9,128], index: 3, kind: output, shape index: {0}]
  %s4 = inlined_call_operand.vmem [shape: f32[2,2,9,128], index: 4, kind: output, shape index: {1}]
  %s5 = inlined_call_operand.vmem [shape: f32[2,2,1,128], index: 5, kind: output, shape index: {2}]
  %s6 = inlined_call_operand.vmem [shape: f32[2,2,9,128], index: 6, kind: output, shape index: {3}]
  %s7 = inlined_call_operand.vmem [shape: f32[2,2,9,128], index: 7, kind: output, shape index: {4}]
  %s8 = inlined_call_operand.vmem [shape: f32[2,2,1,128], index: 8, kind: output, shape index: {5}]
  %s9 = inlined_call_operand.vmem [shape: f32[2,2,9,128], index: 9, kind: output, shape index: {6}]
  %10 = xla_tuple %s3, %s4, %s5, %s6, %s7, %s8, %s9
  %s11 = sld [smem:[#allocation0]]
  $region143: #{focal_dice_loss.1} parent=0
    _
  %s13 = ssub.s32 1, %s11
  %s14 = scalar_select 0, %s13, %s11
  $region1: #{focal_dice_loss.1} parent=0
    #allocation2 [shape = 'u8[131072]{0}', space=vmem, size = 0x20000, scoped, tag = 'input window, operand 0']
    #allocation3 [shape = 'u8[131072]{0}', space=vmem, size = 0x20000, scoped, tag = 'input window, operand 1']
    loop: start=0, step=1, limit=10
    $region2: #{focal_dice_loss.1} parent=1 // loop_pre_header
      _
    $region3: #{focal_dice_loss.1} parent=1 // loop_header
      %s16 = sphi 0, %s20
      %p17 = scmp.ge.s32.totalorder %s16, 10
      %s23 = sphi 0, %s35
      %s24 = sphi 0, %s31
      %s25 = sphi 0, %s23
      %s26 = sphi 0, %s24
      %s27 = sphi 0, %s25
      %s28 = sphi 0, %s26
      %s42 = sphi 0, %s44
      %s45 = sphi 0, %s42
      %s46 = sphi 0, %s45
      %s62 = sphi 0, %s46
      %s72 = sphi 0, %s74
      %s75 = sphi 0, %s72
      %s76 = sphi 0, %s75
      %s92 = sphi 0, %s76
      %s102 = sphi 0, %s104
      %s105 = sphi 0, %s102
      %s106 = sphi 0, %s105
      %s122 = sphi 0, %s106
      %s128 = sphi 0, %s130
      %s131 = sphi 0, %s128
      %s132 = sphi 0, %s131
      %s148 = sphi 0, %s132
      %s154 = sphi 0, %s156
      %s157 = sphi 0, %s154
      %s158 = sphi 0, %s157
      %s174 = sphi 0, %s158
      %s180 = sphi 0, %s182
      %s183 = sphi 0, %s180
      %s184 = sphi 0, %s183
      %s200 = sphi 0, %s184
      %s206 = sphi 0, %s208
      %s209 = sphi 0, %s206
      %s210 = sphi 0, %s209
      %s226 = sphi 0, %s210
      %s232 = sphi 0, %s234
      %s235 = sphi 0, %s232
      %s236 = sphi 0, %s235
      %s252 = sphi 0, %s236
      %s258 = sphi 0, %s260
      %s261 = sphi 0, %s258
      %s262 = sphi 0, %s261
      %s278 = sphi 0, %s262
      %s284 = sphi 0, %s286
      %s287 = sphi 0, %s284
      %s288 = sphi 0, %s287
      %s304 = sphi 0, %s288
    $region4: #{focal_dice_loss.1} parent=1 // loop_header_branch
      %19 = sbr.rel (%p17) target = $region8
    $region5: #{focal_dice_loss.1} parent=1 // loop_body
      %s21 = ssub.s32 %s16, 1
      %s22 = ssub.s32 %s16, 2
      %s29 = sadd.s32 1, %s24
      %p30 = scmp.ge.s32.totalorder %s29, 4
      %s31 = scalar_select %p30, 0, %s29
      %s32 = sadd.s32 1, %s23
      %s33 = scalar_select %p30, %s32, %s23
      %p34 = scmp.ge.s32.totalorder %s33, 2
      %s35 = scalar_select %p34, 0, %s33
      %s36 = smul.u32 %s23, 4
      %s37 = sadd.s32 %s36, %s24
      %s38 = smul.u32 %s35, 4
      %s39 = sadd.s32 %s38, %s31
      %s40 = ssub.s32 %s37, %s39
      %p41 = scmp.eq.s32.totalorder %s40, 0
      %s43 = sadd.s32 %s42, 1
      %s44 = scalar_select %p41, %s42, %s43
      %p47 = pneg %p41
      %p48 = scmp.eq.s32.totalorder %s16, 7
      %p49 = por %p47, %p48
      %p50 = scmp.ne.s32.totalorder %s42, %s45
      %p51 = scmp.eq.s32.totalorder %s16, 0
      %p52 = por %p50, %p51
      %p53 = scmp.ne.s32.totalorder %s42, %s45
      %p54 = scmp.eq.s32.totalorder %s21, 7
      %p55 = por %p53, %p54
      %p56 = scmp.ne.s32.totalorder %s45, %s46
      %p57 = scmp.eq.s32.totalorder %s21, 0
      %p58 = por %p56, %p57
      %p59 = scmp.ne.s32.totalorder %s45, %s46
      %p60 = scmp.eq.s32.totalorder %s22, 7
      %p61 = por %p59, %p60
      %p63 = scmp.ne.s32.totalorder %s46, %s62
      %p64 = scmp.eq.s32.totalorder %s22, 0
      %p65 = por %p63, %p64
      %s66 = smul.u32 %s23, 4
      %s67 = sadd.s32 %s66, %s24
      %s68 = smul.u32 %s35, 4
      %s69 = sadd.s32 %s68, %s31
      %s70 = ssub.s32 %s67, %s69
      %p71 = scmp.eq.s32.totalorder %s70, 0
      %s73 = sadd.s32 %s72, 1
      %s74 = scalar_select %p71, %s72, %s73
      %p77 = pneg %p71
      %p78 = scmp.eq.s32.totalorder %s16, 7
      %p79 = por %p77, %p78
      %p80 = scmp.ne.s32.totalorder %s72, %s75
      %p81 = scmp.eq.s32.totalorder %s16, 0
      %p82 = por %p80, %p81
      %p83 = scmp.ne.s32.totalorder %s72, %s75
      %p84 = scmp.eq.s32.totalorder %s21, 7
      %p85 = por %p83, %p84
      %p86 = scmp.ne.s32.totalorder %s75, %s76
      %p87 = scmp.eq.s32.totalorder %s21, 0
      %p88 = por %p86, %p87
      %p89 = scmp.ne.s32.totalorder %s75, %s76
      %p90 = scmp.eq.s32.totalorder %s22, 7
      %p91 = por %p89, %p90
      %p93 = scmp.ne.s32.totalorder %s76, %s92
      %p94 = scmp.eq.s32.totalorder %s22, 0
      %p95 = por %p93, %p94
      %s96 = smul.u32 %s23, 4
      %s97 = sadd.s32 %s96, %s24
      %s98 = smul.u32 %s35, 4
      %s99 = sadd.s32 %s98, %s31
      %s100 = ssub.s32 %s97, %s99
      %p101 = scmp.eq.s32.totalorder %s100, 0
      %s103 = sadd.s32 %s102, 1
      %s104 = scalar_select %p101, %s102, %s103
      %p107 = pneg %p101
      %p108 = scmp.eq.s32.totalorder %s16, 7
      %p109 = por %p107, %p108
      %p110 = scmp.ne.s32.totalorder %s102, %s105
      %p111 = scmp.eq.s32.totalorder %s16, 0
      %p112 = por %p110, %p111
      %p113 = scmp.ne.s32.totalorder %s102, %s105
      %p114 = scmp.eq.s32.totalorder %s21, 7
      %p115 = por %p113, %p114
      %p116 = scmp.ne.s32.totalorder %s105, %s106
      %p117 = scmp.eq.s32.totalorder %s21, 0
      %p118 = por %p116, %p117
      %p119 = scmp.ne.s32.totalorder %s105, %s106
      %p120 = scmp.eq.s32.totalorder %s22, 7
      %p121 = por %p119, %p120
      %p123 = scmp.ne.s32.totalorder %s106, %s122
      %p124 = scmp.eq.s32.totalorder %s22, 0
      %p125 = por %p123, %p124
      %s126 = ssub.s32 %s23, %s35
      %p127 = scmp.eq.s32.totalorder %s126, 0
      %s129 = sadd.s32 %s128, 1
      %s130 = scalar_select %p127, %s128, %s129
      %p133 = pneg %p127
      %p134 = scmp.eq.s32.totalorder %s16, 7
      %p135 = por %p133, %p134
      %p136 = scmp.ne.s32.totalorder %s128, %s131
      %p137 = scmp.eq.s32.totalorder %s16, 0
      %p138 = por %p136, %p137
      %p139 = scmp.ne.s32.totalorder %s128, %s131
      %p140 = scmp.eq.s32.totalorder %s21, 7
      %p141 = por %p139, %p140
      %p142 = scmp.ne.s32.totalorder %s131, %s132
      %p143 = scmp.eq.s32.totalorder %s21, 0
      %p144 = por %p142, %p143
      %p145 = scmp.ne.s32.totalorder %s131, %s132
      %p146 = scmp.eq.s32.totalorder %s22, 7
      %p147 = por %p145, %p146
      %p149 = scmp.ne.s32.totalorder %s132, %s148
      %p150 = scmp.eq.s32.totalorder %s22, 0
      %p151 = por %p149, %p150
      %s152 = ssub.s32 %s23, %s35
      %p153 = scmp.eq.s32.totalorder %s152, 0
      %s155 = sadd.s32 %s154, 1
      %s156 = scalar_select %p153, %s154, %s155
      %p159 = pneg %p153
      %p160 = scmp.eq.s32.totalorder %s16, 7
      %p161 = por %p159, %p160
      %p162 = scmp.ne.s32.totalorder %s154, %s157
      %p163 = scmp.eq.s32.totalorder %s16, 0
      %p164 = por %p162, %p163
      %p165 = scmp.ne.s32.totalorder %s154, %s157
      %p166 = scmp.eq.s32.totalorder %s21, 7
      %p167 = por %p165, %p166
      %p168 = scmp.ne.s32.totalorder %s157, %s158
      %p169 = scmp.eq.s32.totalorder %s21, 0
      %p170 = por %p168, %p169
      %p171 = scmp.ne.s32.totalorder %s157, %s158
      %p172 = scmp.eq.s32.totalorder %s22, 7
      %p173 = por %p171, %p172
      %p175 = scmp.ne.s32.totalorder %s158, %s174
      %p176 = scmp.eq.s32.totalorder %s22, 0
      %p177 = por %p175, %p176
      %s178 = ssub.s32 %s23, %s35
      %p179 = scmp.eq.s32.totalorder %s178, 0
      %s181 = sadd.s32 %s180, 1
      %s182 = scalar_select %p179, %s180, %s181
      %p185 = pneg %p179
      %p186 = scmp.eq.s32.totalorder %s16, 7
      %p187 = por %p185, %p186
      %p188 = scmp.ne.s32.totalorder %s180, %s183
      %p189 = scmp.eq.s32.totalorder %s16, 0
      %p190 = por %p188, %p189
      %p191 = scmp.ne.s32.totalorder %s180, %s183
      %p192 = scmp.eq.s32.totalorder %s21, 7
      %p193 = por %p191, %p192
      %p194 = scmp.ne.s32.totalorder %s183, %s184
      %p195 = scmp.eq.s32.totalorder %s21, 0
      %p196 = por %p194, %p195
      %p197 = scmp.ne.s32.totalorder %s183, %s184
      %p198 = scmp.eq.s32.totalorder %s22, 7
      %p199 = por %p197, %p198
      %p201 = scmp.ne.s32.totalorder %s184, %s200
      %p202 = scmp.eq.s32.totalorder %s22, 0
      %p203 = por %p201, %p202
      %s204 = ssub.s32 %s23, %s35
      %p205 = scmp.eq.s32.totalorder %s204, 0
      %s207 = sadd.s32 %s206, 1
      %s208 = scalar_select %p205, %s206, %s207
      %p211 = pneg %p205
      %p212 = scmp.eq.s32.totalorder %s16, 7
      %p213 = por %p211, %p212
      %p214 = scmp.ne.s32.totalorder %s206, %s209
      %p215 = scmp.eq.s32.totalorder %s16, 0
      %p216 = por %p214, %p215
      %p217 = scmp.ne.s32.totalorder %s206, %s209
      %p218 = scmp.eq.s32.totalorder %s21, 7
      %p219 = por %p217, %p218
      %p220 = scmp.ne.s32.totalorder %s209, %s210
      %p221 = scmp.eq.s32.totalorder %s21, 0
      %p222 = por %p220, %p221
      %p223 = scmp.ne.s32.totalorder %s209, %s210
      %p224 = scmp.eq.s32.totalorder %s22, 7
      %p225 = por %p223, %p224
      %p227 = scmp.ne.s32.totalorder %s210, %s226
      %p228 = scmp.eq.s32.totalorder %s22, 0
      %p229 = por %p227, %p228
      %s230 = ssub.s32 %s23, %s35
      %p231 = scmp.eq.s32.totalorder %s230, 0
      %s233 = sadd.s32 %s232, 1
      %s234 = scalar_select %p231, %s232, %s233
      %p237 = pneg %p231
      %p238 = scmp.eq.s32.totalorder %s16, 7
      %p239 = por %p237, %p238
      %p240 = scmp.ne.s32.totalorder %s232, %s235
      %p241 = scmp.eq.s32.totalorder %s16, 0
      %p242 = por %p240, %p241
      %p243 = scmp.ne.s32.totalorder %s232, %s235
      %p244 = scmp.eq.s32.totalorder %s21, 7
      %p245 = por %p243, %p244
      %p246 = scmp.ne.s32.totalorder %s235, %s236
      %p247 = scmp.eq.s32.totalorder %s21, 0
      %p248 = por %p246, %p247
      %p249 = scmp.ne.s32.totalorder %s235, %s236
      %p250 = scmp.eq.s32.totalorder %s22, 7
      %p251 = por %p249, %p250
      %p253 = scmp.ne.s32.totalorder %s236, %s252
      %p254 = scmp.eq.s32.totalorder %s22, 0
      %p255 = por %p253, %p254
      %s256 = ssub.s32 %s23, %s35
      %p257 = scmp.eq.s32.totalorder %s256, 0
      %s259 = sadd.s32 %s258, 1
      %s260 = scalar_select %p257, %s258, %s259
      %p263 = pneg %p257
      %p264 = scmp.eq.s32.totalorder %s16, 7
      %p265 = por %p263, %p264
      %p266 = scmp.ne.s32.totalorder %s258, %s261
      %p267 = scmp.eq.s32.totalorder %s16, 0
      %p268 = por %p266, %p267
      %p269 = scmp.ne.s32.totalorder %s258, %s261
      %p270 = scmp.eq.s32.totalorder %s21, 7
      %p271 = por %p269, %p270
      %p272 = scmp.ne.s32.totalorder %s261, %s262
      %p273 = scmp.eq.s32.totalorder %s21, 0
      %p274 = por %p272, %p273
      %p275 = scmp.ne.s32.totalorder %s261, %s262
      %p276 = scmp.eq.s32.totalorder %s22, 7
      %p277 = por %p275, %p276
      %p279 = scmp.ne.s32.totalorder %s262, %s278
      %p280 = scmp.eq.s32.totalorder %s22, 0
      %p281 = por %p279, %p280
      %s282 = ssub.s32 %s23, %s35
      %p283 = scmp.eq.s32.totalorder %s282, 0
      %s285 = sadd.s32 %s284, 1
      %s286 = scalar_select %p283, %s284, %s285
      %p289 = pneg %p283
      %p290 = scmp.eq.s32.totalorder %s16, 7
      %p291 = por %p289, %p290
      %p292 = scmp.ne.s32.totalorder %s284, %s287
      %p293 = scmp.eq.s32.totalorder %s16, 0
      %p294 = por %p292, %p293
      %p295 = scmp.ne.s32.totalorder %s284, %s287
      %p296 = scmp.eq.s32.totalorder %s21, 7
      %p297 = por %p295, %p296
      %p298 = scmp.ne.s32.totalorder %s287, %s288
      %p299 = scmp.eq.s32.totalorder %s21, 0
      %p300 = por %p298, %p299
      %p301 = scmp.ne.s32.totalorder %s287, %s288
      %p302 = scmp.eq.s32.totalorder %s22, 7
      %p303 = por %p301, %p302
      %p305 = scmp.ne.s32.totalorder %s288, %s304
      %p306 = scmp.eq.s32.totalorder %s22, 0
      %p307 = por %p305, %p306
      %p308 = scmp.le.s32.totalorder 1, %s16
      %p309 = scmp.lt.s32.totalorder %s16, 9
      %p310 = pnand %p308, %p309
      %p311 = pneg %p310
      // Predicated region
      $region9: #{focal_dice_loss.1} parent=5 // pred_check
        _
      $region10: #{focal_dice_loss.1} parent=5 // pred_check_branch
        %313 = sbr.rel (%p310) target = $region12
      $region11: #{focal_dice_loss.1} parent=5 // pred_region
        %s314 = ssub.s32 %s16, 1
      $region12: #{focal_dice_loss.1} parent=5 // pred_fallthru
        _
      %p315 = scmp.lt.s32.totalorder %s16, 8
      // Predicated region
      $region13: #{focal_dice_loss.1} parent=5 // pred_check
        %p316 = pneg %p315
      $region14: #{focal_dice_loss.1} parent=5 // pred_check_branch
        %318 = sbr.rel (%p316) target = $region16
      $region15: #{focal_dice_loss.1} parent=5 // pred_region
        // Predicated region
        $region17: #{focal_dice_loss.1} parent=15 // pred_check
          %p319 = pneg %p52
        $region18: #{focal_dice_loss.1} parent=15 // pred_check_branch
          %321 = sbr.rel (%p319) target = $region20
        $region19: #{focal_dice_loss.1} parent=15 // pred_region
          %s322 = sand.u32 %s42, 1
          %s323 = sand.u32 %s42, 1
          %s324 = smul.addr %s323, 128
          %s325 = scalar_lea.vmem [#allocation2], %s324
          %s326 = smul.u32 %s23, 4
          %s327 = sadd.s32 %s326, %s24
          %s328 = smul.u32 4, %s327
          %s329 = smul.addr %s328, 8
          %s330 = scalar_lea.vmem %s0, %s329
          // Predicated region
          $region21: #{focal_dice_loss.1} parent=19 // pred_check
            _
          $region22: #{focal_dice_loss.1} parent=19 // pred_check_branch
            %332 = sbr.rel (0) target = $region24
          $region23: #{focal_dice_loss.1} parent=19 // pred_region
            // Predicated region
            $region25: #{focal_dice_loss.1} parent=23 // pred_check
              _
            $region26: #{focal_dice_loss.1} parent=23 // pred_check_branch
              %334 = sbr.rel (0) target = $region28
            $region27: #{focal_dice_loss.1} parent=23 // pred_region
              loop: start=0, step=1, limit=1
              $region29: #{focal_dice_loss.1} parent=27 // loop_pre_header
                _
              $region30: #{focal_dice_loss.1} parent=27 // loop_header
                %s336 = sphi 0, %s340
                %p337 = scmp.ge.s32.totalorder %s336, 1
                %s341 = sphi %s330, %s330
                %s342 = sphi %s325, %s325
              $region31: #{focal_dice_loss.1} parent=27 // loop_header_branch
                %339 = sbr.rel (%p337) target = $region35
              $region32: #{focal_dice_loss.1} parent=27 // loop_body
                %v343 = vld [vmem:[%s341] sm:$0xff]
                %344 = vst [vmem:[%s342] sm:$0xff] %v343
                %v345 = vld [vmem:[%s341 + $0x8] sm:$0xff]
                %346 = vst [vmem:[%s342 + $0x8] sm:$0xff] %v345
                %v347 = vld [vmem:[%s341 + $0x10] sm:$0xff]
                %348 = vst [vmem:[%s342 + $0x10] sm:$0xff] %v347
                %v349 = vld [vmem:[%s341 + $0x18] sm:$0xff]
                %350 = vst [vmem:[%s342 + $0x18] sm:$0xff] %v349
                %v351 = vld [vmem:[%s341 + $0x100] sm:$0xff]
                %352 = vst [vmem:[%s342 + $0x20] sm:$0xff] %v351
                %v353 = vld [vmem:[%s341 + $0x108] sm:$0xff]
                %354 = vst [vmem:[%s342 + $0x28] sm:$0xff] %v353
                %v355 = vld [vmem:[%s341 + $0x110] sm:$0xff]
                %356 = vst [vmem:[%s342 + $0x30] sm:$0xff] %v355
                %v357 = vld [vmem:[%s341 + $0x118] sm:$0xff]
                %358 = vst [vmem:[%s342 + $0x38] sm:$0xff] %v357
                %v359 = vld [vmem:[%s341 + $0x200] sm:$0xff]
                %360 = vst [vmem:[%s342 + $0x40] sm:$0xff] %v359
                %v361 = vld [vmem:[%s341 + $0x208] sm:$0xff]
                %362 = vst [vmem:[%s342 + $0x48] sm:$0xff] %v361
                %v363 = vld [vmem:[%s341 + $0x210] sm:$0xff]
                %364 = vst [vmem:[%s342 + $0x50] sm:$0xff] %v363
                %v365 = vld [vmem:[%s341 + $0x218] sm:$0xff]
                %366 = vst [vmem:[%s342 + $0x58] sm:$0xff] %v365
                %v367 = vld [vmem:[%s341 + $0x300] sm:$0xff]
                %368 = vst [vmem:[%s342 + $0x60] sm:$0xff] %v367
                %v369 = vld [vmem:[%s341 + $0x308] sm:$0xff]
                %370 = vst [vmem:[%s342 + $0x68] sm:$0xff] %v369
                %v371 = vld [vmem:[%s341 + $0x310] sm:$0xff]
                %372 = vst [vmem:[%s342 + $0x70] sm:$0xff] %v371
                %v373 = vld [vmem:[%s341 + $0x318] sm:$0xff]
                %374 = vst [vmem:[%s342 + $0x78] sm:$0xff] %v373
              $region33: #{focal_dice_loss.1} parent=27 // loop_footer
                %s340 = sadd.s32 1, %s336
              $region34: #{focal_dice_loss.1} parent=27 // loop_footer_branch
                %335 = sbr.rel target = $region30
              $region35: #{focal_dice_loss.1} parent=27 // loop_exit
                _
            $region28: #{focal_dice_loss.1} parent=23 // pred_fallthru
              _
            // Predicated region
            $region36: #{focal_dice_loss.1} parent=23 // pred_check
              _
            $region37: #{focal_dice_loss.1} parent=23 // pred_check_branch
              %376 = sbr.rel target = $region39
            $region38: #{focal_dice_loss.1} parent=23 // pred_region
              _
            $region39: #{focal_dice_loss.1} parent=23 // pred_fallthru
              _
          $region24: #{focal_dice_loss.1} parent=19 // pred_fallthru
            _
          %377 = vnop
        $region20: #{focal_dice_loss.1} parent=15 // pred_fallthru
          _
        // Predicated region
        $region40: #{focal_dice_loss.1} parent=15 // pred_check
          %p378 = pneg %p82
        $region41: #{focal_dice_loss.1} parent=15 // pred_check_branch
          %380 = sbr.rel (%p378) target = $region43
        $region42: #{focal_dice_loss.1} parent=15 // pred_region
          %s381 = sand.u32 %s72, 1
          %s382 = sand.u32 %s72, 1
          %s383 = smul.addr %s382, 128
          %s384 = scalar_lea.vmem [#allocation3], %s383
          %s385 = smul.u32 %s23, 4
          %s386 = sadd.s32 %s385, %s24
          %s387 = smul.u32 4, %s386
          %s388 = smul.addr %s387, 8
          %s389 = scalar_lea.vmem %s1, %s388
          // Predicated region
          $region44: #{focal_dice_loss.1} parent=42 // pred_check
            _
          $region45: #{focal_dice_loss.1} parent=42 // pred_check_branch
            %391 = sbr.rel (0) target = $region47
          $region46: #{focal_dice_loss.1} parent=42 // pred_region
            // Predicated region
            $region48: #{focal_dice_loss.1} parent=46 // pred_check
              _
            $region49: #{focal_dice_loss.1} parent=46 // pred_check_branch
              %393 = sbr.rel (0) target = $region51
            $region50: #{focal_dice_loss.1} parent=46 // pred_region
              loop: start=0, step=1, limit=1
              $region52: #{focal_dice_loss.1} parent=50 // loop_pre_header
                _
              $region53: #{focal_dice_loss.1} parent=50 // loop_header
                %s395 = sphi 0, %s399
                %p396 = scmp.ge.s32.totalorder %s395, 1
                %s400 = sphi %s389, %s389
                %s401 = sphi %s384, %s384
              $region54: #{focal_dice_loss.1} parent=50 // loop_header_branch
                %398 = sbr.rel (%p396) target = $region58
              $region55: #{focal_dice_loss.1} parent=50 // loop_body
                %v402 = vld [vmem:[%s400] sm:$0xff]
                %403 = vst [vmem:[%s401] sm:$0xff] %v402
                %v404 = vld [vmem:[%s400 + $0x8] sm:$0xff]
                %405 = vst [vmem:[%s401 + $0x8] sm:$0xff] %v404
                %v406 = vld [vmem:[%s400 + $0x10] sm:$0xff]
                %407 = vst [vmem:[%s401 + $0x10] sm:$0xff] %v406
                %v408 = vld [vmem:[%s400 + $0x18] sm:$0xff]
                %409 = vst [vmem:[%s401 + $0x18] sm:$0xff] %v408
                %v410 = vld [vmem:[%s400 + $0x100] sm:$0xff]
                %411 = vst [vmem:[%s401 + $0x20] sm:$0xff] %v410
                %v412 = vld [vmem:[%s400 + $0x108] sm:$0xff]
                %413 = vst [vmem:[%s401 + $0x28] sm:$0xff] %v412
                %v414 = vld [vmem:[%s400 + $0x110] sm:$0xff]
                %415 = vst [vmem:[%s401 + $0x30] sm:$0xff] %v414
                %v416 = vld [vmem:[%s400 + $0x118] sm:$0xff]
                %417 = vst [vmem:[%s401 + $0x38] sm:$0xff] %v416
                %v418 = vld [vmem:[%s400 + $0x200] sm:$0xff]
                %419 = vst [vmem:[%s401 + $0x40] sm:$0xff] %v418
                %v420 = vld [vmem:[%s400 + $0x208] sm:$0xff]
                %421 = vst [vmem:[%s401 + $0x48] sm:$0xff] %v420
                %v422 = vld [vmem:[%s400 + $0x210] sm:$0xff]
                %423 = vst [vmem:[%s401 + $0x50] sm:$0xff] %v422
                %v424 = vld [vmem:[%s400 + $0x218] sm:$0xff]
                %425 = vst [vmem:[%s401 + $0x58] sm:$0xff] %v424
                %v426 = vld [vmem:[%s400 + $0x300] sm:$0xff]
                %427 = vst [vmem:[%s401 + $0x60] sm:$0xff] %v426
                %v428 = vld [vmem:[%s400 + $0x308] sm:$0xff]
                %429 = vst [vmem:[%s401 + $0x68] sm:$0xff] %v428
                %v430 = vld [vmem:[%s400 + $0x310] sm:$0xff]
                %431 = vst [vmem:[%s401 + $0x70] sm:$0xff] %v430
                %v432 = vld [vmem:[%s400 + $0x318] sm:$0xff]
                %433 = vst [vmem:[%s401 + $0x78] sm:$0xff] %v432
              $region56: #{focal_dice_loss.1} parent=50 // loop_footer
                %s399 = sadd.s32 1, %s395
              $region57: #{focal_dice_loss.1} parent=50 // loop_footer_branch
                %394 = sbr.rel target = $region53
              $region58: #{focal_dice_loss.1} parent=50 // loop_exit
                _
            $region51: #{focal_dice_loss.1} parent=46 // pred_fallthru
              _
            // Predicated region
            $region59: #{focal_dice_loss.1} parent=46 // pred_check
              _
            $region60: #{focal_dice_loss.1} parent=46 // pred_check_branch
              %435 = sbr.rel target = $region62
            $region61: #{focal_dice_loss.1} parent=46 // pred_region
              _
            $region62: #{focal_dice_loss.1} parent=46 // pred_fallthru
              _
          $region47: #{focal_dice_loss.1} parent=42 // pred_fallthru
            _
          %436 = vnop
        $region43: #{focal_dice_loss.1} parent=15 // pred_fallthru
          _
        // Predicated region
        $region63: #{focal_dice_loss.1} parent=15 // pred_check
          %p437 = pneg %p112
        $region64: #{focal_dice_loss.1} parent=15 // pred_check_branch
          %439 = sbr.rel (%p437) target = $region66
        $region65: #{focal_dice_loss.1} parent=15 // pred_region
          %s440 = smul.u32 %s23, 4
          %s441 = sadd.s32 %s440, %s24
          %s442 = smul.u32 4, %s441
          %p443 = scmp.lt.s32.totalorder %s442, 31
          %s444 = scalar_select %p443, %s442, 31
          %s445 = smul.addr %s444, 2
          %s446 = scalar_lea.vmem %s2, %s445
          %s447 = smul.u32 %s23, 4
          %s448 = sadd.s32 %s447, %s24
          %s449 = smul.u32 4, %s448
        $region66: #{focal_dice_loss.1} parent=15 // pred_fallthru
          _
      $region16: #{focal_dice_loss.1} parent=5 // pred_fallthru
        _
      %p450 = scmp.le.s32.totalorder 1, %s16
      %p451 = scmp.lt.s32.totalorder %s16, 9
      %p452 = pnand %p450, %p451
      %p453 = pneg %p452
      // Predicated region
      $region67: #{focal_dice_loss.1} parent=5 // pred_check
        _
      $region68: #{focal_dice_loss.1} parent=5 // pred_check_branch
        %455 = sbr.rel (%p452) target = $region70
      $region69: #{focal_dice_loss.1} parent=5 // pred_region
        %s456 = ssub.s32 %s16, 1
        %s457 = sand.u32 %s45, 1
        %s458 = sand.u32 %s45, 1
        %s459 = smul.addr %s458, 128
        %s460 = scalar_lea.vmem [#allocation2], %s459
        // Predicated region
        $region71: #{focal_dice_loss.1} parent=69 // pred_check
          %p461 = pneg %p58
        $region72: #{focal_dice_loss.1} parent=69 // pred_check_branch
          %463 = sbr.rel (%p461) target = $region74
        $region73: #{focal_dice_loss.1} parent=69 // pred_region
          _
        $region74: #{focal_dice_loss.1} parent=69 // pred_fallthru
          _
        %s464 = sand.u32 %s75, 1
        %s465 = sand.u32 %s75, 1
        %s466 = smul.addr %s465, 128
        %s467 = scalar_lea.vmem [#allocation3], %s466
        // Predicated region
        $region75: #{focal_dice_loss.1} parent=69 // pred_check
          %p468 = pneg %p88
        $region76: #{focal_dice_loss.1} parent=69 // pred_check_branch
          %470 = sbr.rel (%p468) target = $region78
        $region77: #{focal_dice_loss.1} parent=69 // pred_region
          _
        $region78: #{focal_dice_loss.1} parent=69 // pred_fallthru
          _
        %s471 = sand.u32 %s45, 1
        %s472 = sand.u32 %s45, 1
        %s473 = smul.addr %s472, 128
        %s474 = scalar_lea.vmem [#allocation2], %s473
        %p475 = pneg %p58
        %p476 = pneg %p55
        %s477 = sand.u32 %s75, 1
        %s478 = sand.u32 %s75, 1
        %s479 = smul.addr %s478, 128
        %s480 = scalar_lea.vmem [#allocation3], %s479
        %p481 = pneg %p88
        %p482 = pneg %p85
        %s483 = smul.u32 %s25, 4
        %s484 = sadd.s32 %s483, %s26
        %s485 = smul.u32 4, %s484
        %p486 = scmp.lt.s32.totalorder %s485, 31
        %s487 = scalar_select %p486, %s485, 31
        %s488 = smul.addr %s487, 2
        %s489 = scalar_lea.vmem %s2, %s488
        %p490 = pneg %p118
        %p491 = pneg %p115
        %p492 = pneg %p144
        %p493 = pneg %p141
        %p494 = scmp.lt.s32.totalorder %s25, 1
        %s495 = scalar_select %p494, %s25, 1
        %s496 = smul.addr %s495, 4
        %s497 = smul.addr %s496, 8
        %s498 = scalar_lea.vmem %s3, %s497
        %p499 = pneg %p170
        %p500 = pneg %p167
        %p501 = scmp.lt.s32.totalorder %s25, 1
        %s502 = scalar_select %p501, %s25, 1
        %s503 = smul.addr %s502, 4
        %s504 = smul.addr %s503, 8
        %s505 = scalar_lea.vmem %s4, %s504
        %p506 = pneg %p196
        %p507 = pneg %p193
        %p508 = scmp.lt.s32.totalorder %s25, 1
        %s509 = scalar_select %p508, %s25, 1
        %s510 = smul.addr %s509, 2
        %s511 = scalar_lea.vmem %s5, %s510
        %p512 = pneg %p222
        %p513 = pneg %p219
        %p514 = scmp.lt.s32.totalorder %s25, 1
        %s515 = scalar_select %p514, %s25, 1
        %s516 = smul.addr %s515, 4
        %s517 = smul.addr %s516, 8
        %s518 = scalar_lea.vmem %s6, %s517
        %p519 = pneg %p248
        %p520 = pneg %p245
        %p521 = scmp.lt.s32.totalorder %s25, 1
        %s522 = scalar_select %p521, %s25, 1
        %s523 = smul.addr %s522, 4
        %s524 = smul.addr %s523, 8
        %s525 = scalar_lea.vmem %s7, %s524
        %p526 = pneg %p274
        %p527 = pneg %p271
        %p528 = scmp.lt.s32.totalorder %s25, 1
        %s529 = scalar_select %p528, %s25, 1
        %s530 = smul.addr %s529, 2
        %s531 = scalar_lea.vmem %s8, %s530
        %p532 = pneg %p300
        %p533 = pneg %p297
        %p534 = scmp.lt.s32.totalorder %s25, 1
        %s535 = scalar_select %p534, %s25, 1
        %s536 = smul.addr %s535, 4
        %s537 = smul.addr %s536, 8
        %s538 = scalar_lea.vmem %s9, %s537
        %s539 = smul.u32 %s25, 4
        %s540 = sadd.s32 %s539, %s26
        %s541 = smul.u32 4, %s540
        %s542 = smul.u32 %s25, 4
        %s543 = sadd.s32 %s542, %s26
        %s544 = smul.u32 4, %s543
        %s545 = smul.u32 %s25, 4
        %s546 = sadd.s32 %s545, %s26
        %s547 = smul.u32 4, %s546
        %p548 = scmp.lt.s32.totalorder %s547, 31
        %s549 = scalar_select %p548, %s547, 31
        %s550 = smul.addr %s549, 2
        %s551 = scalar_lea.vmem %s2, %s550
        %s552 = smul.u32 %s25, 4
        %s553 = sadd.s32 %s552, %s26
        %s554 = smul.u32 4, %s553
        %p555 = scmp.lt.s32.totalorder %s25, 1
        %s556 = scalar_select %p555, %s25, 1
        %s557 = smul.addr %s556, 4
        %s558 = smul.addr %s557, 8
        %s559 = scalar_lea.vmem %s3, %s558
        %p560 = scmp.lt.s32.totalorder %s25, 1
        %s561 = scalar_select %p560, %s25, 1
        %s562 = smul.addr %s561, 4
        %s563 = smul.addr %s562, 8
        %s564 = scalar_lea.vmem %s4, %s563
        %p565 = scmp.lt.s32.totalorder %s25, 1
        %s566 = scalar_select %p565, %s25, 1
        %s567 = smul.addr %s566, 2
        %s568 = scalar_lea.vmem %s5, %s567
        %p569 = scmp.lt.s32.totalorder %s25, 1
        %s570 = scalar_select %p569, %s25, 1
        %s571 = smul.addr %s570, 4
        %s572 = smul.addr %s571, 8
        %s573 = scalar_lea.vmem %s6, %s572
        %p574 = scmp.lt.s32.totalorder %s25, 1
        %s575 = scalar_select %p574, %s25, 1
        %s576 = smul.addr %s575, 4
        %s577 = smul.addr %s576, 8
        %s578 = scalar_lea.vmem %s7, %s577
        %p579 = scmp.lt.s32.totalorder %s25, 1
        %s580 = scalar_select %p579, %s25, 1
        %s581 = smul.addr %s580, 2
        %s582 = scalar_lea.vmem %s8, %s581
        %p583 = scmp.lt.s32.totalorder %s25, 1
        %s584 = scalar_select %p583, %s25, 1
        %s585 = smul.addr %s584, 4
        %s586 = smul.addr %s585, 8
        %s587 = scalar_lea.vmem %s9, %s586
        %p588 = scmp.eq.s32.totalorder %s26, 0
        // Predicated region
        $region79: #{focal_dice_loss.1} parent=69 // pred_check
          %p589 = pneg %p588
        $region80: #{focal_dice_loss.1} parent=69 // pred_check_branch
          %591 = sbr.rel (%p589) target = $region82
        $region81: #{focal_dice_loss.1} parent=69 // pred_region
          %592 = vst [vmem:[%s559] sm:$0xff] 0.0
          %593 = vst [vmem:[%s559 + $0x8] sm:$0x1] 0.0
          %594 = vst [vmem:[%s559 + $0x10] sm:$0xff] 0.0
          %595 = vst [vmem:[%s559 + $0x18] sm:$0x1] 0.0
          %596 = vst [vmem:[%s564] sm:$0xff] 0.0
          %597 = vst [vmem:[%s564 + $0x8] sm:$0x1] 0.0
          %598 = vst [vmem:[%s564 + $0x10] sm:$0xff] 0.0
          %599 = vst [vmem:[%s564 + $0x18] sm:$0x1] 0.0
          %600 = vst [vmem:[%s568] sm:$0x1] 0.0
          %601 = vst [vmem:[%s568 + $0x1] sm:$0x1] 0.0
          %602 = vst [vmem:[%s573] sm:$0xff] 0.0
          %603 = vst [vmem:[%s573 + $0x8] sm:$0x1] 0.0
          %604 = vst [vmem:[%s573 + $0x10] sm:$0xff] 0.0
          %605 = vst [vmem:[%s573 + $0x18] sm:$0x1] 0.0
          %606 = vst [vmem:[%s578] sm:$0xff] 0.0
          %607 = vst [vmem:[%s578 + $0x8] sm:$0x1] 0.0
          %608 = vst [vmem:[%s578 + $0x10] sm:$0xff] 0.0
          %609 = vst [vmem:[%s578 + $0x18] sm:$0x1] 0.0
          %610 = vst [vmem:[%s582] sm:$0x1] 0.0
          %611 = vst [vmem:[%s582 + $0x1] sm:$0x1] 0.0
          %612 = vst [vmem:[%s587] sm:$0xff] 0.0
          %613 = vst [vmem:[%s587 + $0x8] sm:$0x1] 0.0
          %614 = vst [vmem:[%s587 + $0x10] sm:$0xff] 0.0
          %615 = vst [vmem:[%s587 + $0x18] sm:$0x1] 0.0
        $region82: #{focal_dice_loss.1} parent=69 // pred_fallthru
          _
        %v616 = vld [vmem:[%s551] sm:$0xff]
        %v617 = vlaneseq
        %v618 = vshrl.u32 %v617, 7
        %v619 = vadd.s32 %v618, 8
        %vm620 = vcmp.eq.s32.totalorder %v618, 1
        %vm621 = vcmp.eq.s32.totalorder %v619, 1
        %v622 = vsel %vm620, 1, 4294967295
        %v623 = vsel %vm621, 1, 4294967295
        %vm624 = vcmp.eq.s32.totalorder %v618, 0
        %vm625 = vcmp.eq.s32.totalorder %v619, 0
        %v626 = vsel %vm624, 1, 4294967295
        %v627 = vsel %vm625, 1, 4294967295
        %vm628 = vcmp.eq.s32.totalorder %v618, 2
        %vm629 = vcmp.eq.s32.totalorder %v619, 2
        %v630 = vsel %vm628, 3, %v622
        %v631 = vsel %vm629, 3, %v623
        %v632 = vsel %vm620, 3, %v626
        %v633 = vsel %vm621, 3, %v627
        %vm634 = vcmp.eq.s32.totalorder %v618, 3
        %vm635 = vcmp.eq.s32.totalorder %v619, 3
        %v636 = vsel %vm634, 4, %v630
        %v637 = vsel %vm635, 4, %v631
        %v638 = vsel %vm628, 4, %v632
        %v639 = vsel %vm629, 4, %v633
        %vm640 = vcmp.eq.s32.totalorder %v618, 4
        %vm641 = vcmp.eq.s32.totalorder %v619, 4
        %v642 = vsel %vm640, 5, %v636
        %v643 = vsel %vm641, 5, %v637
        %v644 = vsel %vm634, 5, %v638
        %v645 = vsel %vm635, 5, %v639
        %vm646 = vcmp.eq.s32.totalorder %v618, 5
        %vm647 = vcmp.eq.s32.totalorder %v619, 5
        %v648 = vsel %vm646, 6, %v642
        %v649 = vsel %vm647, 6, %v643
        %v650 = vsel %vm640, 6, %v644
        %v651 = vsel %vm641, 6, %v645
        %vm652 = vcmp.eq.s32.totalorder %v618, 6
        %vm653 = vcmp.eq.s32.totalorder %v619, 6
        %v654 = vsel %vm652, 7, %v648
        %v655 = vsel %vm653, 7, %v649
        %v656 = vsel %vm646, 7, %v650
        %v657 = vsel %vm647, 7, %v651
        %vm658 = vcmp.eq.s32.totalorder %v618, 7
        %vm659 = vcmp.eq.s32.totalorder %v619, 7
        %v660 = vsel %vm658, 11, %v654
        %v661 = vsel %vm659, 11, %v655
        %v662 = vsel %vm652, 11, %v656
        %v663 = vsel %vm653, 11, %v657
        %vm664 = vcmp.eq.s32.totalorder %v618, 8
        %vm665 = vcmp.eq.s32.totalorder %v619, 8
        %v666 = vsel %vm664, 14, %v660
        %v667 = vsel %vm665, 14, %v661
        %v668 = vsel %vm658, 14, %v662
        %v669 = vsel %vm659, 14, %v663
        %v671 = vunpack.c.l.s4 1966171168
        %v672 = vunpack.c.0.s8 %v671
        %v673 = vlaneseq
        %v674 = vshrl.u32 %v673, 7
        %v675 = vsub.s32 %v672, %v674
        %v676 = vrot.slane %v616, %v675
        %v677 = vcombine.high %v676, %v676
        %v678 = vlaneseq
        %v679 = vshrl.u32 %v678, 7
        %v680 = vsub.s32 0, %v679
        %v681 = vrot.slane %v676, %v680
        %v682 = vlaneseq
        %v683 = vshrl.u32 %v682, 7
        %v684 = vsub.s32 1, %v683
        %v685 = vrot.slane %v676, %v684
        %v686 = vlaneseq
        %v687 = vshrl.u32 %v686, 7
        %v688 = vsub.s32 2, %v687
        %v689 = vrot.slane %v676, %v688
        %v690 = vlaneseq
        %v691 = vshrl.u32 %v690, 7
        %v692 = vsub.s32 3, %v691
        %v693 = vrot.slane %v676, %v692
        %v694 = vlaneseq
        %v695 = vshrl.u32 %v694, 7
        %v696 = vsub.s32 0, %v695
        %v697 = vrot.slane %v677, %v696
        %v698 = vlaneseq
        %v699 = vshrl.u32 %v698, 7
        %v700 = vsub.s32 1, %v699
        %v701 = vrot.slane %v677, %v700
        %v702 = vlaneseq
        %v703 = vshrl.u32 %v702, 7
        %v704 = vsub.s32 2, %v703
        %v705 = vrot.slane %v677, %v704
        %v706 = vlaneseq
        %v707 = vshrl.u32 %v706, 7
        %v708 = vsub.s32 3, %v707
        %v709 = vrot.slane %v677, %v708
        %vm710 = vcmp.eq.s32.totalorder %v681, %v666
        %vm711 = vcmp.eq.s32.totalorder %v685, %v666
        %vm712 = vcmp.eq.s32.totalorder %v689, %v666
        %vm713 = vcmp.eq.s32.totalorder %v693, %v666
        %vm714 = vcmp.eq.s32.totalorder %v681, %v667
        %vm715 = vcmp.eq.s32.totalorder %v685, %v667
        %vm716 = vcmp.eq.s32.totalorder %v689, %v667
        %vm717 = vcmp.eq.s32.totalorder %v693, %v667
        %vm718 = vcmp.eq.s32.totalorder %v697, %v666
        %vm719 = vcmp.eq.s32.totalorder %v701, %v666
        %vm720 = vcmp.eq.s32.totalorder %v705, %v666
        %vm721 = vcmp.eq.s32.totalorder %v709, %v666
        %vm722 = vcmp.eq.s32.totalorder %v697, %v667
        %vm723 = vcmp.eq.s32.totalorder %v701, %v667
        %vm724 = vcmp.eq.s32.totalorder %v705, %v667
        %vm725 = vcmp.eq.s32.totalorder %v709, %v667
        %v726 = vsel %vm710, 1, 0
        %v727 = vsel %vm711, 1, 0
        %v728 = vsel %vm712, 1, 0
        %v729 = vsel %vm713, 1, 0
        %v730 = vsel %vm714, 1, 0
        %v731 = vsel %vm715, 1, 0
        %v732 = vsel %vm716, 1, 0
        %v733 = vsel %vm717, 1, 0
        %v734 = vsel %vm718, 1, 0
        %v735 = vsel %vm719, 1, 0
        %v736 = vsel %vm720, 1, 0
        %v737 = vsel %vm721, 1, 0
        %v738 = vsel %vm722, 1, 0
        %v739 = vsel %vm723, 1, 0
        %v740 = vsel %vm724, 1, 0
        %v741 = vsel %vm725, 1, 0
        %v742 = vcvt.s32.f32 %v726
        %v743 = vcvt.s32.f32 %v727
        %v744 = vcvt.s32.f32 %v728
        %v745 = vcvt.s32.f32 %v729
        %v746 = vcvt.s32.f32 %v730
        %v747 = vcvt.s32.f32 %v731
        %v748 = vcvt.s32.f32 %v732
        %v749 = vcvt.s32.f32 %v733
        %v750 = vcvt.s32.f32 %v734
        %v751 = vcvt.s32.f32 %v735
        %v752 = vcvt.s32.f32 %v736
        %v753 = vcvt.s32.f32 %v737
        %v754 = vcvt.s32.f32 %v738
        %v755 = vcvt.s32.f32 %v739
        %v756 = vcvt.s32.f32 %v740
        %v757 = vcvt.s32.f32 %v741
        %vm758 = vcmp.eq.s32.totalorder %v681, %v668
        %vm759 = vcmp.eq.s32.totalorder %v685, %v668
        %vm760 = vcmp.eq.s32.totalorder %v689, %v668
        %vm761 = vcmp.eq.s32.totalorder %v693, %v668
        %vm762 = vcmp.eq.s32.totalorder %v681, %v669
        %vm763 = vcmp.eq.s32.totalorder %v685, %v669
        %vm764 = vcmp.eq.s32.totalorder %v689, %v669
        %vm765 = vcmp.eq.s32.totalorder %v693, %v669
        %vm766 = vcmp.eq.s32.totalorder %v697, %v668
        %vm767 = vcmp.eq.s32.totalorder %v701, %v668
        %vm768 = vcmp.eq.s32.totalorder %v705, %v668
        %vm769 = vcmp.eq.s32.totalorder %v709, %v668
        %vm770 = vcmp.eq.s32.totalorder %v697, %v669
        %vm771 = vcmp.eq.s32.totalorder %v701, %v669
        %vm772 = vcmp.eq.s32.totalorder %v705, %v669
        %vm773 = vcmp.eq.s32.totalorder %v709, %v669
        %v774 = vsel %vm758, 1, 0
        %v775 = vsel %vm759, 1, 0
        %v776 = vsel %vm760, 1, 0
        %v777 = vsel %vm761, 1, 0
        %v778 = vsel %vm762, 1, 0
        %v779 = vsel %vm763, 1, 0
        %v780 = vsel %vm764, 1, 0
        %v781 = vsel %vm765, 1, 0
        %v782 = vsel %vm766, 1, 0
        %v783 = vsel %vm767, 1, 0
        %v784 = vsel %vm768, 1, 0
        %v785 = vsel %vm769, 1, 0
        %v786 = vsel %vm770, 1, 0
        %v787 = vsel %vm771, 1, 0
        %v788 = vsel %vm772, 1, 0
        %v789 = vsel %vm773, 1, 0
        %v790 = vcvt.s32.f32 %v774
        %v791 = vcvt.s32.f32 %v775
        %v792 = vcvt.s32.f32 %v776
        %v793 = vcvt.s32.f32 %v777
        %v794 = vcvt.s32.f32 %v778
        %v795 = vcvt.s32.f32 %v779
        %v796 = vcvt.s32.f32 %v780
        %v797 = vcvt.s32.f32 %v781
        %v798 = vcvt.s32.f32 %v782
        %v799 = vcvt.s32.f32 %v783
        %v800 = vcvt.s32.f32 %v784
        %v801 = vcvt.s32.f32 %v785
        %v802 = vcvt.s32.f32 %v786
        %v803 = vcvt.s32.f32 %v787
        %v804 = vcvt.s32.f32 %v788
        %v805 = vcvt.s32.f32 %v789
        %v806 = vld [vmem:[%s587] sm:$0xff]
        %v807 = vld [vmem:[%s587 + $0x8] sm:$0x1]
        %v808 = vld [vmem:[%s587 + $0x10] sm:$0xff]
        %v809 = vld [vmem:[%s587 + $0x18] sm:$0x1]
        %v810 = vadd.f32 %v742, %v743
        %v811 = vadd.f32 %v746, %v747
        %v812 = vadd.f32 %v750, %v751
        %v813 = vadd.f32 %v754, %v755
        %v814 = vadd.f32 %v744, %v745
        %v815 = vadd.f32 %v748, %v749
        %v816 = vadd.f32 %v752, %v753
        %v817 = vadd.f32 %v756, %v757
        %v818 = vadd.f32 %v810, %v814
        %v819 = vadd.f32 %v811, %v815
        %v820 = vadd.f32 %v812, %v816
        %v821 = vadd.f32 %v813, %v817
        %v822 = vadd.f32 %v806, %v818
        %v823 = vadd.f32 %v807, %v819
        %v824 = vadd.f32 %v808, %v820
        %v825 = vadd.f32 %v809, %v821
        %826 = vst [vmem:[%s587] sm:$0xff] %v822
        %827 = vst [vmem:[%s587 + $0x8] sm:$0x1] %v823
        %828 = vst [vmem:[%s587 + $0x10] sm:$0xff] %v824
        %829 = vst [vmem:[%s587 + $0x18] sm:$0x1] %v825
        %v830 = vld [vmem:[%s460] sm:$0xff]
        %v831 = vld [vmem:[%s460 + $0x8] sm:$0xff]
        %v832 = vld [vmem:[%s460 + $0x10] sm:$0xff]
        %v833 = vld [vmem:[%s460 + $0x18] sm:$0xff]
        %v834 = vld [vmem:[%s460 + $0x20] sm:$0x1]
        %v835 = vld [vmem:[%s460 + $0x28] sm:$0x1]
        %v836 = vld [vmem:[%s460 + $0x30] sm:$0x1]
        %v837 = vld [vmem:[%s460 + $0x38] sm:$0x1]
        %v838 = vld [vmem:[%s460 + $0x40] sm:$0xff]
        %v839 = vld [vmem:[%s460 + $0x48] sm:$0xff]
        %v840 = vld [vmem:[%s460 + $0x50] sm:$0xff]
        %v841 = vld [vmem:[%s460 + $0x58] sm:$0xff]
        %v842 = vld [vmem:[%s460 + $0x60] sm:$0x1]
        %v843 = vld [vmem:[%s460 + $0x68] sm:$0x1]
        %v844 = vld [vmem:[%s460 + $0x70] sm:$0x1]
        %v845 = vld [vmem:[%s460 + $0x78] sm:$0x1]
        %v846 = vmin.f32 %v830, 0.9
        %v847 = vmin.f32 %v831, 0.9
        %v848 = vmin.f32 %v832, 0.9
        %v849 = vmin.f32 %v833, 0.9
        %v850 = vmin.f32 %v834, 0.9
        %v851 = vmin.f32 %v835, 0.9
        %v852 = vmin.f32 %v836, 0.9
        %v853 = vmin.f32 %v837, 0.9
        %v854 = vmin.f32 %v838, 0.9
        %v855 = vmin.f32 %v839, 0.9
        %v856 = vmin.f32 %v840, 0.9
        %v857 = vmin.f32 %v841, 0.9
        %v858 = vmin.f32 %v842, 0.9
        %v859 = vmin.f32 %v843, 0.9
        %v860 = vmin.f32 %v844, 0.9
        %v861 = vmin.f32 %v845, 0.9
        %v862 = vld [vmem:[%s564] sm:$0xff]
        %v863 = vld [vmem:[%s564 + $0x8] sm:$0x1]
        %v864 = vld [vmem:[%s564 + $0x10] sm:$0xff]
        %v865 = vld [vmem:[%s564 + $0x18] sm:$0x1]
        %v866 = vadd.f32 %v846, %v847
        %v867 = vadd.f32 %v850, %v851
        %v868 = vadd.f32 %v854, %v855
        %v869 = vadd.f32 %v858, %v859
        %v870 = vadd.f32 %v848, %v849
        %v871 = vadd.f32 %v852, %v853
        %v872 = vadd.f32 %v856, %v857
        %v873 = vadd.f32 %v860, %v861
        %v874 = vadd.f32 %v866, %v870
        %v875 = vadd.f32 %v867, %v871
        %v876 = vadd.f32 %v868, %v872
        %v877 = vadd.f32 %v869, %v873
        %v878 = vadd.f32 %v862, %v874
        %v879 = vadd.f32 %v863, %v875
        %v880 = vadd.f32 %v864, %v876
        %v881 = vadd.f32 %v865, %v877
        %882 = vst [vmem:[%s564] sm:$0xff] %v878
        %883 = vst [vmem:[%s564 + $0x8] sm:$0x1] %v879
        %884 = vst [vmem:[%s564 + $0x10] sm:$0xff] %v880
        %885 = vst [vmem:[%s564 + $0x18] sm:$0x1] %v881
        %v886 = vld [vmem:[%s559] sm:$0xff]
        %v887 = vld [vmem:[%s559 + $0x8] sm:$0x1]
        %v888 = vld [vmem:[%s559 + $0x10] sm:$0xff]
        %v889 = vld [vmem:[%s559 + $0x18] sm:$0x1]
        %v890 = vmul.f32 %v846, %v742
        %v891 = vmul.f32 %v847, %v743
        %v892 = vmul.f32 %v848, %v744
        %v893 = vmul.f32 %v849, %v745
        %v894 = vmul.f32 %v850, %v746
        %v895 = vmul.f32 %v851, %v747
        %v896 = vmul.f32 %v852, %v748
        %v897 = vmul.f32 %v853, %v749
        %v898 = vmul.f32 %v854, %v750
        %v899 = vmul.f32 %v855, %v751
        %v900 = vmul.f32 %v856, %v752
        %v901 = vmul.f32 %v857, %v753
        %v902 = vmul.f32 %v858, %v754
        %v903 = vmul.f32 %v859, %v755
        %v904 = vmul.f32 %v860, %v756
        %v905 = vmul.f32 %v861, %v757
        %v906 = vadd.f32 %v890, %v891
        %v907 = vadd.f32 %v894, %v895
        %v908 = vadd.f32 %v898, %v899
        %v909 = vadd.f32 %v902, %v903
        %v910 = vadd.f32 %v892, %v893
        %v911 = vadd.f32 %v896, %v897
        %v912 = vadd.f32 %v900, %v901
        %v913 = vadd.f32 %v904, %v905
        %v914 = vadd.f32 %v906, %v910
        %v915 = vadd.f32 %v907, %v911
        %v916 = vadd.f32 %v908, %v912
        %v917 = vadd.f32 %v909, %v913
        %v918 = vadd.f32 %v886, %v914
        %v919 = vadd.f32 %v887, %v915
        %v920 = vadd.f32 %v888, %v916
        %v921 = vadd.f32 %v889, %v917
        %922 = vst [vmem:[%s559] sm:$0xff] %v918
        %923 = vst [vmem:[%s559 + $0x8] sm:$0x1] %v919
        %924 = vst [vmem:[%s559 + $0x10] sm:$0xff] %v920
        %925 = vst [vmem:[%s559 + $0x18] sm:$0x1] %v921
        %vm926 = vcmask 1040384
        %v927 = vsel %vm926, %v834, -inf
        %v928 = vmax.f32 %v830, %v927
        %v929 = vrot.slane %v928, 4
        %v930 = vmax.f32 %v928, %v929
        %v931 = vrot.slane %v930, 2
        %v932 = vmax.f32 %v930, %v931
        %v933 = vrot.slane %v932, 1
        %v934 = vmax.f32 %v932, %v933
        %v935 = vsel %vm926, %v835, -inf
        %v936 = vmax.f32 %v831, %v935
        %v937 = vrot.slane %v936, 4
        %v938 = vmax.f32 %v936, %v937
        %v939 = vrot.slane %v938, 2
        %v940 = vmax.f32 %v938, %v939
        %v941 = vrot.slane %v940, 1
        %v942 = vmax.f32 %v940, %v941
        %v943 = vsel %vm926, %v836, -inf
        %v944 = vmax.f32 %v832, %v943
        %v945 = vrot.slane %v944, 4
        %v946 = vmax.f32 %v944, %v945
        %v947 = vrot.slane %v946, 2
        %v948 = vmax.f32 %v946, %v947
        %v949 = vrot.slane %v948, 1
        %v950 = vmax.f32 %v948, %v949
        %v951 = vsel %vm926, %v837, -inf
        %v952 = vmax.f32 %v833, %v951
        %v953 = vrot.slane %v952, 4
        %v954 = vmax.f32 %v952, %v953
        %v955 = vrot.slane %v954, 2
        %v956 = vmax.f32 %v954, %v955
        %v957 = vrot.slane %v956, 1
        %v958 = vmax.f32 %v956, %v957
        %v959 = vsel %vm926, %v842, -inf
        %v960 = vmax.f32 %v838, %v959
        %v961 = vrot.slane %v960, 4
        %v962 = vmax.f32 %v960, %v961
        %v963 = vrot.slane %v962, 2
        %v964 = vmax.f32 %v962, %v963
        %v965 = vrot.slane %v964, 1
        %v966 = vmax.f32 %v964, %v965
        %v967 = vsel %vm926, %v843, -inf
        %v968 = vmax.f32 %v839, %v967
        %v969 = vrot.slane %v968, 4
        %v970 = vmax.f32 %v968, %v969
        %v971 = vrot.slane %v970, 2
        %v972 = vmax.f32 %v970, %v971
        %v973 = vrot.slane %v972, 1
        %v974 = vmax.f32 %v972, %v973
        %v975 = vsel %vm926, %v844, -inf
        %v976 = vmax.f32 %v840, %v975
        %v977 = vrot.slane %v976, 4
        %v978 = vmax.f32 %v976, %v977
        %v979 = vrot.slane %v978, 2
        %v980 = vmax.f32 %v978, %v979
        %v981 = vrot.slane %v980, 1
        %v982 = vmax.f32 %v980, %v981
        %v983 = vsel %vm926, %v845, -inf
        %v984 = vmax.f32 %v841, %v983
        %v985 = vrot.slane %v984, 4
        %v986 = vmax.f32 %v984, %v985
        %v987 = vrot.slane %v986, 2
        %v988 = vmax.f32 %v986, %v987
        %v989 = vrot.slane %v988, 1
        %v990 = vmax.f32 %v988, %v989
        %v991 = vsub.f32 %v830, %v934
        %v992 = vsub.f32 %v831, %v942
        %v993 = vsub.f32 %v832, %v950
        %v994 = vsub.f32 %v833, %v958
        %v995 = vsub.f32 %v834, %v934
        %v996 = vsub.f32 %v835, %v942
        %v997 = vsub.f32 %v836, %v950
        %v998 = vsub.f32 %v837, %v958
        %v999 = vsub.f32 %v838, %v966
        %v1000 = vsub.f32 %v839, %v974
        %v1001 = vsub.f32 %v840, %v982
        %v1002 = vsub.f32 %v841, %v990
        %v1003 = vsub.f32 %v842, %v966
        %v1004 = vsub.f32 %v843, %v974
        %v1005 = vsub.f32 %v844, %v982
        %v1006 = vsub.f32 %v845, %v990
        %v1007 = vmul.f32 %v991, 1.442695
        %v1008 = vpow.pop %v1007
        %v1009 = vmul.f32 %v992, 1.442695
        %v1010 = vpow.pop %v1009
        %v1011 = vmul.f32 %v993, 1.442695
        %v1012 = vpow.pop %v1011
        %v1013 = vmul.f32 %v994, 1.442695
        %v1014 = vpow.pop %v1013
        %v1015 = vmul.f32 %v995, 1.442695
        %v1016 = vpow.pop %v1015
        %v1017 = vmul.f32 %v996, 1.442695
        %v1018 = vpow.pop %v1017
        %v1019 = vmul.f32 %v997, 1.442695
        %v1020 = vpow.pop %v1019
        %v1021 = vmul.f32 %v998, 1.442695
        %v1022 = vpow.pop %v1021
        %v1023 = vmul.f32 %v999, 1.442695
        %v1024 = vpow.pop %v1023
        %v1025 = vmul.f32 %v1000, 1.442695
        %v1026 = vpow.pop %v1025
        %v1027 = vmul.f32 %v1001, 1.442695
        %v1028 = vpow.pop %v1027
        %v1029 = vmul.f32 %v1002, 1.442695
        %v1030 = vpow.pop %v1029
        %v1031 = vmul.f32 %v1003, 1.442695
        %v1032 = vpow.pop %v1031
        %v1033 = vmul.f32 %v1004, 1.442695
        %v1034 = vpow.pop %v1033
        %v1035 = vmul.f32 %v1005, 1.442695
        %v1036 = vpow.pop %v1035
        %v1037 = vmul.f32 %v1006, 1.442695
        %v1038 = vpow.pop %v1037
        %v1039 = vsel %vm926, %v1016, 0.0
        %v1040 = vadd.f32 %v1008, %v1039
        %v1041 = vrot.slane %v1040, 4
        %v1042 = vadd.f32 %v1040, %v1041
        %v1043 = vrot.slane %v1042, 2
        %v1044 = vadd.f32 %v1042, %v1043
        %v1045 = vrot.slane %v1044, 1
        %v1046 = vadd.f32 %v1044, %v1045
        %v1047 = vsel %vm926, %v1018, 0.0
        %v1048 = vadd.f32 %v1010, %v1047
        %v1049 = vrot.slane %v1048, 4
        %v1050 = vadd.f32 %v1048, %v1049
        %v1051 = vrot.slane %v1050, 2
        %v1052 = vadd.f32 %v1050, %v1051
        %v1053 = vrot.slane %v1052, 1
        %v1054 = vadd.f32 %v1052, %v1053
        %v1055 = vsel %vm926, %v1020, 0.0
        %v1056 = vadd.f32 %v1012, %v1055
        %v1057 = vrot.slane %v1056, 4
        %v1058 = vadd.f32 %v1056, %v1057
        %v1059 = vrot.slane %v1058, 2
        %v1060 = vadd.f32 %v1058, %v1059
        %v1061 = vrot.slane %v1060, 1
        %v1062 = vadd.f32 %v1060, %v1061
        %v1063 = vsel %vm926, %v1022, 0.0
        %v1064 = vadd.f32 %v1014, %v1063
        %v1065 = vrot.slane %v1064, 4
        %v1066 = vadd.f32 %v1064, %v1065
        %v1067 = vrot.slane %v1066, 2
        %v1068 = vadd.f32 %v1066, %v1067
        %v1069 = vrot.slane %v1068, 1
        %v1070 = vadd.f32 %v1068, %v1069
        %v1071 = vsel %vm926, %v1032, 0.0
        %v1072 = vadd.f32 %v1024, %v1071
        %v1073 = vrot.slane %v1072, 4
        %v1074 = vadd.f32 %v1072, %v1073
        %v1075 = vrot.slane %v1074, 2
        %v1076 = vadd.f32 %v1074, %v1075
        %v1077 = vrot.slane %v1076, 1
        %v1078 = vadd.f32 %v1076, %v1077
        %v1079 = vsel %vm926, %v1034, 0.0
        %v1080 = vadd.f32 %v1026, %v1079
        %v1081 = vrot.slane %v1080, 4
        %v1082 = vadd.f32 %v1080, %v1081
        %v1083 = vrot.slane %v1082, 2
        %v1084 = vadd.f32 %v1082, %v1083
        %v1085 = vrot.slane %v1084, 1
        %v1086 = vadd.f32 %v1084, %v1085
        %v1087 = vsel %vm926, %v1036, 0.0
        %v1088 = vadd.f32 %v1028, %v1087
        %v1089 = vrot.slane %v1088, 4
        %v1090 = vadd.f32 %v1088, %v1089
        %v1091 = vrot.slane %v1090, 2
        %v1092 = vadd.f32 %v1090, %v1091
        %v1093 = vrot.slane %v1092, 1
        %v1094 = vadd.f32 %v1092, %v1093
        %v1095 = vsel %vm926, %v1038, 0.0
        %v1096 = vadd.f32 %v1030, %v1095
        %v1097 = vrot.slane %v1096, 4
        %v1098 = vadd.f32 %v1096, %v1097
        %v1099 = vrot.slane %v1098, 2
        %v1100 = vadd.f32 %v1098, %v1099
        %v1101 = vrot.slane %v1100, 1
        %v1102 = vadd.f32 %v1100, %v1101
        %v1103 = vlaneseq
        %v1104 = vshrl.u32 %v1103, 7
        %v1105 = vsub.s32 0, %v1104
        %v1106 = vrot.slane %v830, %v1105
        %v1107 = vlaneseq
        %v1108 = vshrl.u32 %v1107, 7
        %v1109 = vsub.s32 0, %v1108
        %v1110 = vrot.slane %v831, %v1109
        %v1111 = vlaneseq
        %v1112 = vshrl.u32 %v1111, 7
        %v1113 = vsub.s32 0, %v1112
        %v1114 = vrot.slane %v832, %v1113
        %v1115 = vlaneseq
        %v1116 = vshrl.u32 %v1115, 7
        %v1117 = vsub.s32 0, %v1116
        %v1118 = vrot.slane %v833, %v1117
        %v1119 = vlaneseq
        %v1120 = vshrl.u32 %v1119, 7
        %v1121 = vsub.s32 0, %v1120
        %v1122 = vrot.slane %v838, %v1121
        %v1123 = vlaneseq
        %v1124 = vshrl.u32 %v1123, 7
        %v1125 = vsub.s32 0, %v1124
        %v1126 = vrot.slane %v839, %v1125
        %v1127 = vlaneseq
        %v1128 = vshrl.u32 %v1127, 7
        %v1129 = vsub.s32 0, %v1128
        %v1130 = vrot.slane %v840, %v1129
        %v1131 = vlaneseq
        %v1132 = vshrl.u32 %v1131, 7
        %v1133 = vsub.s32 0, %v1132
        %v1134 = vrot.slane %v841, %v1133
        %v1135 = vsub.f32 %v830, %v1106
        %v1136 = vsub.f32 %v831, %v1110
        %v1137 = vsub.f32 %v832, %v1114
        %v1138 = vsub.f32 %v833, %v1118
        %v1139 = vsub.f32 %v834, %v1106
        %v1140 = vsub.f32 %v835, %v1110
        %v1141 = vsub.f32 %v836, %v1114
        %v1142 = vsub.f32 %v837, %v1118
        %v1143 = vsub.f32 %v838, %v1122
        %v1144 = vsub.f32 %v839, %v1126
        %v1145 = vsub.f32 %v840, %v1130
        %v1146 = vsub.f32 %v841, %v1134
        %v1147 = vsub.f32 %v842, %v1122
        %v1148 = vsub.f32 %v843, %v1126
        %v1149 = vsub.f32 %v844, %v1130
        %v1150 = vsub.f32 %v845, %v1134
        %v1151 = vmul.f32 %v1135, %v790
        %v1152 = vmul.f32 %v1136, %v791
        %v1153 = vmul.f32 %v1137, %v792
        %v1154 = vmul.f32 %v1138, %v793
        %v1155 = vmul.f32 %v1139, %v794
        %v1156 = vmul.f32 %v1140, %v795
        %v1157 = vmul.f32 %v1141, %v796
        %v1158 = vmul.f32 %v1142, %v797
        %v1159 = vmul.f32 %v1143, %v798
        %v1160 = vmul.f32 %v1144, %v799
        %v1161 = vmul.f32 %v1145, %v800
        %v1162 = vmul.f32 %v1146, %v801
        %v1163 = vmul.f32 %v1147, %v802
        %v1164 = vmul.f32 %v1148, %v803
        %v1165 = vmul.f32 %v1149, %v804
        %v1166 = vmul.f32 %v1150, %v805
        %v1167 = vsel %vm926, %v1155, 0.0
        %v1168 = vadd.f32 %v1151, %v1167
        %v1169 = vrot.slane %v1168, 4
        %v1170 = vadd.f32 %v1168, %v1169
        %v1171 = vrot.slane %v1170, 2
        %v1172 = vadd.f32 %v1170, %v1171
        %v1173 = vrot.slane %v1172, 1
        %v1174 = vadd.f32 %v1172, %v1173
        %v1175 = vsel %vm926, %v1156, 0.0
        %v1176 = vadd.f32 %v1152, %v1175
        %v1177 = vrot.slane %v1176, 4
        %v1178 = vadd.f32 %v1176, %v1177
        %v1179 = vrot.slane %v1178, 2
        %v1180 = vadd.f32 %v1178, %v1179
        %v1181 = vrot.slane %v1180, 1
        %v1182 = vadd.f32 %v1180, %v1181
        %v1183 = vsel %vm926, %v1157, 0.0
        %v1184 = vadd.f32 %v1153, %v1183
        %v1185 = vrot.slane %v1184, 4
        %v1186 = vadd.f32 %v1184, %v1185
        %v1187 = vrot.slane %v1186, 2
        %v1188 = vadd.f32 %v1186, %v1187
        %v1189 = vrot.slane %v1188, 1
        %v1190 = vadd.f32 %v1188, %v1189
        %v1191 = vsel %vm926, %v1158, 0.0
        %v1192 = vadd.f32 %v1154, %v1191
        %v1193 = vrot.slane %v1192, 4
        %v1194 = vadd.f32 %v1192, %v1193
        %v1195 = vrot.slane %v1194, 2
        %v1196 = vadd.f32 %v1194, %v1195
        %v1197 = vrot.slane %v1196, 1
        %v1198 = vadd.f32 %v1196, %v1197
        %v1199 = vsel %vm926, %v1163, 0.0
        %v1200 = vadd.f32 %v1159, %v1199
        %v1201 = vrot.slane %v1200, 4
        %v1202 = vadd.f32 %v1200, %v1201
        %v1203 = vrot.slane %v1202, 2
        %v1204 = vadd.f32 %v1202, %v1203
        %v1205 = vrot.slane %v1204, 1
        %v1206 = vadd.f32 %v1204, %v1205
        %v1207 = vsel %vm926, %v1164, 0.0
        %v1208 = vadd.f32 %v1160, %v1207
        %v1209 = vrot.slane %v1208, 4
        %v1210 = vadd.f32 %v1208, %v1209
        %v1211 = vrot.slane %v1210, 2
        %v1212 = vadd.f32 %v1210, %v1211
        %v1213 = vrot.slane %v1212, 1
        %v1214 = vadd.f32 %v1212, %v1213
        %v1215 = vsel %vm926, %v1165, 0.0
        %v1216 = vadd.f32 %v1161, %v1215
        %v1217 = vrot.slane %v1216, 4
        %v1218 = vadd.f32 %v1216, %v1217
        %v1219 = vrot.slane %v1218, 2
        %v1220 = vadd.f32 %v1218, %v1219
        %v1221 = vrot.slane %v1220, 1
        %v1222 = vadd.f32 %v1220, %v1221
        %v1223 = vsel %vm926, %v1166, 0.0
        %v1224 = vadd.f32 %v1162, %v1223
        %v1225 = vrot.slane %v1224, 4
        %v1226 = vadd.f32 %v1224, %v1225
        %v1227 = vrot.slane %v1226, 2
        %v1228 = vadd.f32 %v1226, %v1227
        %v1229 = vrot.slane %v1228, 1
        %v1230 = vadd.f32 %v1228, %v1229
        %v1231 = vadd.f32 %v830, %v1174
        %v1232 = vadd.f32 %v831, %v1182
        %v1233 = vadd.f32 %v832, %v1190
        %v1234 = vadd.f32 %v833, %v1198
        %v1235 = vadd.f32 %v838, %v1206
        %v1236 = vadd.f32 %v839, %v1214
        %v1237 = vadd.f32 %v840, %v1222
        %v1238 = vadd.f32 %v841, %v1230
        %v1239 = vlog2.pop %v1046
        %v1240 = vmul.f32 %v1239, 0.6931472
        %v1241 = vlog2.pop %v1054
        %v1242 = vmul.f32 %v1241, 0.6931472
        %v1243 = vlog2.pop %v1062
        %v1244 = vmul.f32 %v1243, 0.6931472
        %v1245 = vlog2.pop %v1070
        %v1246 = vmul.f32 %v1245, 0.6931472
        %v1247 = vlog2.pop %v1078
        %v1248 = vmul.f32 %v1247, 0.6931472
        %v1249 = vlog2.pop %v1086
        %v1250 = vmul.f32 %v1249, 0.6931472
        %v1251 = vlog2.pop %v1094
        %v1252 = vmul.f32 %v1251, 0.6931472
        %v1253 = vlog2.pop %v1102
        %v1254 = vmul.f32 %v1253, 0.6931472
        %v1255 = vadd.f32 %v934, %v1240
        %v1256 = vadd.f32 %v942, %v1242
        %v1257 = vadd.f32 %v950, %v1244
        %v1258 = vadd.f32 %v958, %v1246
        %v1259 = vadd.f32 %v966, %v1248
        %v1260 = vadd.f32 %v974, %v1250
        %v1261 = vadd.f32 %v982, %v1252
        %v1262 = vadd.f32 %v990, %v1254
        %v1263 = vsub.f32 %v1255, %v1231
        %v1264 = vsub.f32 %v1256, %v1232
        %v1265 = vsub.f32 %v1257, %v1233
        %v1266 = vsub.f32 %v1258, %v1234
        %v1267 = vsub.f32 %v1259, %v1235
        %v1268 = vsub.f32 %v1260, %v1236
        %v1269 = vsub.f32 %v1261, %v1237
        %v1270 = vsub.f32 %v1262, %v1238
        %v1271 = vrcp.pop %v1046
        %v1272 = vmul.f32 1.0, %v1271
        %v1273 = vrcp.pop %v1054
        %v1274 = vmul.f32 1.0, %v1273
        %v1275 = vrcp.pop %v1062
        %v1276 = vmul.f32 1.0, %v1275
        %v1277 = vrcp.pop %v1070
        %v1278 = vmul.f32 1.0, %v1277
        %v1279 = vrcp.pop %v1078
        %v1280 = vmul.f32 1.0, %v1279
        %v1281 = vrcp.pop %v1086
        %v1282 = vmul.f32 1.0, %v1281
        %v1283 = vrcp.pop %v1094
        %v1284 = vmul.f32 1.0, %v1283
        %v1285 = vrcp.pop %v1102
        %v1286 = vmul.f32 1.0, %v1285
        %v1287 = vsub.f32 1.0, %v1272
        %v1288 = vsub.f32 1.0, %v1274
        %v1289 = vsub.f32 1.0, %v1276
        %v1290 = vsub.f32 1.0, %v1278
        %v1291 = vsub.f32 1.0, %v1280
        %v1292 = vsub.f32 1.0, %v1282
        %v1293 = vsub.f32 1.0, %v1284
        %v1294 = vsub.f32 1.0, %v1286
        %v1295 = vmul.f32 %v1287, %v1287
        %v1296 = vmul.f32 %v1288, %v1288
        %v1297 = vmul.f32 %v1289, %v1289
        %v1298 = vmul.f32 %v1290, %v1290
        %v1299 = vmul.f32 %v1291, %v1291
        %v1300 = vmul.f32 %v1292, %v1292
        %v1301 = vmul.f32 %v1293, %v1293
        %v1302 = vmul.f32 %v1294, %v1294
        %v1303 = vld [vmem:[%s568] sm:$0x1]
        %v1304 = vld [vmem:[%s568 + $0x1] sm:$0x1]
        %v1305 = vmul.f32 %v1263, %v1295
        %v1306 = vmul.f32 %v1264, %v1296
        %v1307 = vmul.f32 %v1265, %v1297
        %v1308 = vmul.f32 %v1266, %v1298
        %v1309 = vmul.f32 %v1267, %v1299
        %v1310 = vmul.f32 %v1268, %v1300
        %v1311 = vmul.f32 %v1269, %v1301
        %v1312 = vmul.f32 %v1270, %v1302
        %v1313 = vadd.f32 %v1305, %v1306
        %v1314 = vadd.f32 %v1309, %v1310
        %v1315 = vadd.f32 %v1307, %v1308
        %v1316 = vadd.f32 %v1311, %v1312
        %v1317 = vadd.f32 %v1313, %v1315
        %v1318 = vadd.f32 %v1314, %v1316
        %v1319 = vadd.f32 %v1303, %v1317
        %v1320 = vadd.f32 %v1304, %v1318
        %1321 = vst [vmem:[%s568] sm:$0x1] %v1319
        %1322 = vst [vmem:[%s568 + $0x1] sm:$0x1] %v1320
        %v1323 = vld [vmem:[%s467] sm:$0xff]
        %v1324 = vld [vmem:[%s467 + $0x8] sm:$0xff]
        %v1325 = vld [vmem:[%s467 + $0x10] sm:$0xff]
        %v1326 = vld [vmem:[%s467 + $0x18] sm:$0xff]
        %v1327 = vld [vmem:[%s467 + $0x20] sm:$0x1]
        %v1328 = vld [vmem:[%s467 + $0x28] sm:$0x1]
        %v1329 = vld [vmem:[%s467 + $0x30] sm:$0x1]
        %v1330 = vld [vmem:[%s467 + $0x38] sm:$0x1]
        %v1331 = vld [vmem:[%s467 + $0x40] sm:$0xff]
        %v1332 = vld [vmem:[%s467 + $0x48] sm:$0xff]
        %v1333 = vld [vmem:[%s467 + $0x50] sm:$0xff]
        %v1334 = vld [vmem:[%s467 + $0x58] sm:$0xff]
        %v1335 = vld [vmem:[%s467 + $0x60] sm:$0x1]
        %v1336 = vld [vmem:[%s467 + $0x68] sm:$0x1]
        %v1337 = vld [vmem:[%s467 + $0x70] sm:$0x1]
        %v1338 = vld [vmem:[%s467 + $0x78] sm:$0x1]
        %v1339 = vmin.f32 %v1323, 0.9
        %v1340 = vmin.f32 %v1324, 0.9
        %v1341 = vmin.f32 %v1325, 0.9
        %v1342 = vmin.f32 %v1326, 0.9
        %v1343 = vmin.f32 %v1327, 0.9
        %v1344 = vmin.f32 %v1328, 0.9
        %v1345 = vmin.f32 %v1329, 0.9
        %v1346 = vmin.f32 %v1330, 0.9
        %v1347 = vmin.f32 %v1331, 0.9
        %v1348 = vmin.f32 %v1332, 0.9
        %v1349 = vmin.f32 %v1333, 0.9
        %v1350 = vmin.f32 %v1334, 0.9
        %v1351 = vmin.f32 %v1335, 0.9
        %v1352 = vmin.f32 %v1336, 0.9
        %v1353 = vmin.f32 %v1337, 0.9
        %v1354 = vmin.f32 %v1338, 0.9
        %v1355 = vld [vmem:[%s578] sm:$0xff]
        %v1356 = vld [vmem:[%s578 + $0x8] sm:$0x1]
        %v1357 = vld [vmem:[%s578 + $0x10] sm:$0xff]
        %v1358 = vld [vmem:[%s578 + $0x18] sm:$0x1]
        %v1359 = vadd.f32 %v1339, %v1340
        %v1360 = vadd.f32 %v1343, %v1344
        %v1361 = vadd.f32 %v1347, %v1348
        %v1362 = vadd.f32 %v1351, %v1352
        %v1363 = vadd.f32 %v1341, %v1342
        %v1364 = vadd.f32 %v1345, %v1346
        %v1365 = vadd.f32 %v1349, %v1350
        %v1366 = vadd.f32 %v1353, %v1354
        %v1367 = vadd.f32 %v1359, %v1363
        %v1368 = vadd.f32 %v1360, %v1364
        %v1369 = vadd.f32 %v1361, %v1365
        %v1370 = vadd.f32 %v1362, %v1366
        %v1371 = vadd.f32 %v1355, %v1367
        %v1372 = vadd.f32 %v1356, %v1368
        %v1373 = vadd.f32 %v1357, %v1369
        %v1374 = vadd.f32 %v1358, %v1370
        %1375 = vst [vmem:[%s578] sm:$0xff] %v1371
        %1376 = vst [vmem:[%s578 + $0x8] sm:$0x1] %v1372
        %1377 = vst [vmem:[%s578 + $0x10] sm:$0xff] %v1373
        %1378 = vst [vmem:[%s578 + $0x18] sm:$0x1] %v1374
        %v1379 = vld [vmem:[%s573] sm:$0xff]
        %v1380 = vld [vmem:[%s573 + $0x8] sm:$0x1]
        %v1381 = vld [vmem:[%s573 + $0x10] sm:$0xff]
        %v1382 = vld [vmem:[%s573 + $0x18] sm:$0x1]
        %v1383 = vmul.f32 %v1339, %v742
        %v1384 = vmul.f32 %v1340, %v743
        %v1385 = vmul.f32 %v1341, %v744
        %v1386 = vmul.f32 %v1342, %v745
        %v1387 = vmul.f32 %v1343, %v746
        %v1388 = vmul.f32 %v1344, %v747
        %v1389 = vmul.f32 %v1345, %v748
        %v1390 = vmul.f32 %v1346, %v749
        %v1391 = vmul.f32 %v1347, %v750
        %v1392 = vmul.f32 %v1348, %v751
        %v1393 = vmul.f32 %v1349, %v752
        %v1394 = vmul.f32 %v1350, %v753
        %v1395 = vmul.f32 %v1351, %v754
        %v1396 = vmul.f32 %v1352, %v755
        %v1397 = vmul.f32 %v1353, %v756
        %v1398 = vmul.f32 %v1354, %v757
        %v1399 = vadd.f32 %v1383, %v1384
        %v1400 = vadd.f32 %v1387, %v1388
        %v1401 = vadd.f32 %v1391, %v1392
        %v1402 = vadd.f32 %v1395, %v1396
        %v1403 = vadd.f32 %v1385, %v1386
        %v1404 = vadd.f32 %v1389, %v1390
        %v1405 = vadd.f32 %v1393, %v1394
        %v1406 = vadd.f32 %v1397, %v1398
        %v1407 = vadd.f32 %v1399, %v1403
        %v1408 = vadd.f32 %v1400, %v1404
        %v1409 = vadd.f32 %v1401, %v1405
        %v1410 = vadd.f32 %v1402, %v1406
        %v1411 = vadd.f32 %v1379, %v1407
        %v1412 = vadd.f32 %v1380, %v1408
        %v1413 = vadd.f32 %v1381, %v1409
        %v1414 = vadd.f32 %v1382, %v1410
        %1415 = vst [vmem:[%s573] sm:$0xff] %v1411
        %1416 = vst [vmem:[%s573 + $0x8] sm:$0x1] %v1412
        %1417 = vst [vmem:[%s573 + $0x10] sm:$0xff] %v1413
        %1418 = vst [vmem:[%s573 + $0x18] sm:$0x1] %v1414
        %v1419 = vsel %vm926, %v1327, -inf
        %v1420 = vmax.f32 %v1323, %v1419
        %v1421 = vrot.slane %v1420, 4
        %v1422 = vmax.f32 %v1420, %v1421
        %v1423 = vrot.slane %v1422, 2
        %v1424 = vmax.f32 %v1422, %v1423
        %v1425 = vrot.slane %v1424, 1
        %v1426 = vmax.f32 %v1424, %v1425
        %v1427 = vsel %vm926, %v1328, -inf
        %v1428 = vmax.f32 %v1324, %v1427
        %v1429 = vrot.slane %v1428, 4
        %v1430 = vmax.f32 %v1428, %v1429
        %v1431 = vrot.slane %v1430, 2
        %v1432 = vmax.f32 %v1430, %v1431
        %v1433 = vrot.slane %v1432, 1
        %v1434 = vmax.f32 %v1432, %v1433
        %v1435 = vsel %vm926, %v1329, -inf
        %v1436 = vmax.f32 %v1325, %v1435
        %v1437 = vrot.slane %v1436, 4
        %v1438 = vmax.f32 %v1436, %v1437
        %v1439 = vrot.slane %v1438, 2
        %v1440 = vmax.f32 %v1438, %v1439
        %v1441 = vrot.slane %v1440, 1
        %v1442 = vmax.f32 %v1440, %v1441
        %v1443 = vsel %vm926, %v1330, -inf
        %v1444 = vmax.f32 %v1326, %v1443
        %v1445 = vrot.slane %v1444, 4
        %v1446 = vmax.f32 %v1444, %v1445
        %v1447 = vrot.slane %v1446, 2
        %v1448 = vmax.f32 %v1446, %v1447
        %v1449 = vrot.slane %v1448, 1
        %v1450 = vmax.f32 %v1448, %v1449
        %v1451 = vsel %vm926, %v1335, -inf
        %v1452 = vmax.f32 %v1331, %v1451
        %v1453 = vrot.slane %v1452, 4
        %v1454 = vmax.f32 %v1452, %v1453
        %v1455 = vrot.slane %v1454, 2
        %v1456 = vmax.f32 %v1454, %v1455
        %v1457 = vrot.slane %v1456, 1
        %v1458 = vmax.f32 %v1456, %v1457
        %v1459 = vsel %vm926, %v1336, -inf
        %v1460 = vmax.f32 %v1332, %v1459
        %v1461 = vrot.slane %v1460, 4
        %v1462 = vmax.f32 %v1460, %v1461
        %v1463 = vrot.slane %v1462, 2
        %v1464 = vmax.f32 %v1462, %v1463
        %v1465 = vrot.slane %v1464, 1
        %v1466 = vmax.f32 %v1464, %v1465
        %v1467 = vsel %vm926, %v1337, -inf
        %v1468 = vmax.f32 %v1333, %v1467
        %v1469 = vrot.slane %v1468, 4
        %v1470 = vmax.f32 %v1468, %v1469
        %v1471 = vrot.slane %v1470, 2
        %v1472 = vmax.f32 %v1470, %v1471
        %v1473 = vrot.slane %v1472, 1
        %v1474 = vmax.f32 %v1472, %v1473
        %v1475 = vsel %vm926, %v1338, -inf
        %v1476 = vmax.f32 %v1334, %v1475
        %v1477 = vrot.slane %v1476, 4
        %v1478 = vmax.f32 %v1476, %v1477
        %v1479 = vrot.slane %v1478, 2
        %v1480 = vmax.f32 %v1478, %v1479
        %v1481 = vrot.slane %v1480, 1
        %v1482 = vmax.f32 %v1480, %v1481
        %v1483 = vsub.f32 %v1323, %v1426
        %v1484 = vsub.f32 %v1324, %v1434
        %v1485 = vsub.f32 %v1325, %v1442
        %v1486 = vsub.f32 %v1326, %v1450
        %v1487 = vsub.f32 %v1327, %v1426
        %v1488 = vsub.f32 %v1328, %v1434
        %v1489 = vsub.f32 %v1329, %v1442
        %v1490 = vsub.f32 %v1330, %v1450
        %v1491 = vsub.f32 %v1331, %v1458
        %v1492 = vsub.f32 %v1332, %v1466
        %v1493 = vsub.f32 %v1333, %v1474
        %v1494 = vsub.f32 %v1334, %v1482
        %v1495 = vsub.f32 %v1335, %v1458
        %v1496 = vsub.f32 %v1336, %v1466
        %v1497 = vsub.f32 %v1337, %v1474
        %v1498 = vsub.f32 %v1338, %v1482
        %v1499 = vmul.f32 %v1483, 1.442695
        %v1500 = vpow.pop %v1499
        %v1501 = vmul.f32 %v1484, 1.442695
        %v1502 = vpow.pop %v1501
        %v1503 = vmul.f32 %v1485, 1.442695
        %v1504 = vpow.pop %v1503
        %v1505 = vmul.f32 %v1486, 1.442695
        %v1506 = vpow.pop %v1505
        %v1507 = vmul.f32 %v1487, 1.442695
        %v1508 = vpow.pop %v1507
        %v1509 = vmul.f32 %v1488, 1.442695
        %v1510 = vpow.pop %v1509
        %v1511 = vmul.f32 %v1489, 1.442695
        %v1512 = vpow.pop %v1511
        %v1513 = vmul.f32 %v1490, 1.442695
        %v1514 = vpow.pop %v1513
        %v1515 = vmul.f32 %v1491, 1.442695
        %v1516 = vpow.pop %v1515
        %v1517 = vmul.f32 %v1492, 1.442695
        %v1518 = vpow.pop %v1517
        %v1519 = vmul.f32 %v1493, 1.442695
        %v1520 = vpow.pop %v1519
        %v1521 = vmul.f32 %v1494, 1.442695
        %v1522 = vpow.pop %v1521
        %v1523 = vmul.f32 %v1495, 1.442695
        %v1524 = vpow.pop %v1523
        %v1525 = vmul.f32 %v1496, 1.442695
        %v1526 = vpow.pop %v1525
        %v1527 = vmul.f32 %v1497, 1.442695
        %v1528 = vpow.pop %v1527
        %v1529 = vmul.f32 %v1498, 1.442695
        %v1530 = vpow.pop %v1529
        %v1531 = vsel %vm926, %v1508, 0.0
        %v1532 = vadd.f32 %v1500, %v1531
        %v1533 = vrot.slane %v1532, 4
        %v1534 = vadd.f32 %v1532, %v1533
        %v1535 = vrot.slane %v1534, 2
        %v1536 = vadd.f32 %v1534, %v1535
        %v1537 = vrot.slane %v1536, 1
        %v1538 = vadd.f32 %v1536, %v1537
        %v1539 = vsel %vm926, %v1510, 0.0
        %v1540 = vadd.f32 %v1502, %v1539
        %v1541 = vrot.slane %v1540, 4
        %v1542 = vadd.f32 %v1540, %v1541
        %v1543 = vrot.slane %v1542, 2
        %v1544 = vadd.f32 %v1542, %v1543
        %v1545 = vrot.slane %v1544, 1
        %v1546 = vadd.f32 %v1544, %v1545
        %v1547 = vsel %vm926, %v1512, 0.0
        %v1548 = vadd.f32 %v1504, %v1547
        %v1549 = vrot.slane %v1548, 4
        %v1550 = vadd.f32 %v1548, %v1549
        %v1551 = vrot.slane %v1550, 2
        %v1552 = vadd.f32 %v1550, %v1551
        %v1553 = vrot.slane %v1552, 1
        %v1554 = vadd.f32 %v1552, %v1553
        %v1555 = vsel %vm926, %v1514, 0.0
        %v1556 = vadd.f32 %v1506, %v1555
        %v1557 = vrot.slane %v1556, 4
        %v1558 = vadd.f32 %v1556, %v1557
        %v1559 = vrot.slane %v1558, 2
        %v1560 = vadd.f32 %v1558, %v1559
        %v1561 = vrot.slane %v1560, 1
        %v1562 = vadd.f32 %v1560, %v1561
        %v1563 = vsel %vm926, %v1524, 0.0
        %v1564 = vadd.f32 %v1516, %v1563
        %v1565 = vrot.slane %v1564, 4
        %v1566 = vadd.f32 %v1564, %v1565
        %v1567 = vrot.slane %v1566, 2
        %v1568 = vadd.f32 %v1566, %v1567
        %v1569 = vrot.slane %v1568, 1
        %v1570 = vadd.f32 %v1568, %v1569
        %v1571 = vsel %vm926, %v1526, 0.0
        %v1572 = vadd.f32 %v1518, %v1571
        %v1573 = vrot.slane %v1572, 4
        %v1574 = vadd.f32 %v1572, %v1573
        %v1575 = vrot.slane %v1574, 2
        %v1576 = vadd.f32 %v1574, %v1575
        %v1577 = vrot.slane %v1576, 1
        %v1578 = vadd.f32 %v1576, %v1577
        %v1579 = vsel %vm926, %v1528, 0.0
        %v1580 = vadd.f32 %v1520, %v1579
        %v1581 = vrot.slane %v1580, 4
        %v1582 = vadd.f32 %v1580, %v1581
        %v1583 = vrot.slane %v1582, 2
        %v1584 = vadd.f32 %v1582, %v1583
        %v1585 = vrot.slane %v1584, 1
        %v1586 = vadd.f32 %v1584, %v1585
        %v1587 = vsel %vm926, %v1530, 0.0
        %v1588 = vadd.f32 %v1522, %v1587
        %v1589 = vrot.slane %v1588, 4
        %v1590 = vadd.f32 %v1588, %v1589
        %v1591 = vrot.slane %v1590, 2
        %v1592 = vadd.f32 %v1590, %v1591
        %v1593 = vrot.slane %v1592, 1
        %v1594 = vadd.f32 %v1592, %v1593
        %v1595 = vlaneseq
        %v1596 = vshrl.u32 %v1595, 7
        %v1597 = vsub.s32 0, %v1596
        %v1598 = vrot.slane %v1323, %v1597
        %v1599 = vlaneseq
        %v1600 = vshrl.u32 %v1599, 7
        %v1601 = vsub.s32 0, %v1600
        %v1602 = vrot.slane %v1324, %v1601
        %v1603 = vlaneseq
        %v1604 = vshrl.u32 %v1603, 7
        %v1605 = vsub.s32 0, %v1604
        %v1606 = vrot.slane %v1325, %v1605
        %v1607 = vlaneseq
        %v1608 = vshrl.u32 %v1607, 7
        %v1609 = vsub.s32 0, %v1608
        %v1610 = vrot.slane %v1326, %v1609
        %v1611 = vlaneseq
        %v1612 = vshrl.u32 %v1611, 7
        %v1613 = vsub.s32 0, %v1612
        %v1614 = vrot.slane %v1331, %v1613
        %v1615 = vlaneseq
        %v1616 = vshrl.u32 %v1615, 7
        %v1617 = vsub.s32 0, %v1616
        %v1618 = vrot.slane %v1332, %v1617
        %v1619 = vlaneseq
        %v1620 = vshrl.u32 %v1619, 7
        %v1621 = vsub.s32 0, %v1620
        %v1622 = vrot.slane %v1333, %v1621
        %v1623 = vlaneseq
        %v1624 = vshrl.u32 %v1623, 7
        %v1625 = vsub.s32 0, %v1624
        %v1626 = vrot.slane %v1334, %v1625
        %v1627 = vsub.f32 %v1323, %v1598
        %v1628 = vsub.f32 %v1324, %v1602
        %v1629 = vsub.f32 %v1325, %v1606
        %v1630 = vsub.f32 %v1326, %v1610
        %v1631 = vsub.f32 %v1327, %v1598
        %v1632 = vsub.f32 %v1328, %v1602
        %v1633 = vsub.f32 %v1329, %v1606
        %v1634 = vsub.f32 %v1330, %v1610
        %v1635 = vsub.f32 %v1331, %v1614
        %v1636 = vsub.f32 %v1332, %v1618
        %v1637 = vsub.f32 %v1333, %v1622
        %v1638 = vsub.f32 %v1334, %v1626
        %v1639 = vsub.f32 %v1335, %v1614
        %v1640 = vsub.f32 %v1336, %v1618
        %v1641 = vsub.f32 %v1337, %v1622
        %v1642 = vsub.f32 %v1338, %v1626
        %v1643 = vmul.f32 %v1627, %v790
        %v1644 = vmul.f32 %v1628, %v791
        %v1645 = vmul.f32 %v1629, %v792
        %v1646 = vmul.f32 %v1630, %v793
        %v1647 = vmul.f32 %v1631, %v794
        %v1648 = vmul.f32 %v1632, %v795
        %v1649 = vmul.f32 %v1633, %v796
        %v1650 = vmul.f32 %v1634, %v797
        %v1651 = vmul.f32 %v1635, %v798
        %v1652 = vmul.f32 %v1636, %v799
        %v1653 = vmul.f32 %v1637, %v800
        %v1654 = vmul.f32 %v1638, %v801
        %v1655 = vmul.f32 %v1639, %v802
        %v1656 = vmul.f32 %v1640, %v803
        %v1657 = vmul.f32 %v1641, %v804
        %v1658 = vmul.f32 %v1642, %v805
        %v1659 = vsel %vm926, %v1647, 0.0
        %v1660 = vadd.f32 %v1643, %v1659
        %v1661 = vrot.slane %v1660, 4
        %v1662 = vadd.f32 %v1660, %v1661
        %v1663 = vrot.slane %v1662, 2
        %v1664 = vadd.f32 %v1662, %v1663
        %v1665 = vrot.slane %v1664, 1
        %v1666 = vadd.f32 %v1664, %v1665
        %v1667 = vsel %vm926, %v1648, 0.0
        %v1668 = vadd.f32 %v1644, %v1667
        %v1669 = vrot.slane %v1668, 4
        %v1670 = vadd.f32 %v1668, %v1669
        %v1671 = vrot.slane %v1670, 2
        %v1672 = vadd.f32 %v1670, %v1671
        %v1673 = vrot.slane %v1672, 1
        %v1674 = vadd.f32 %v1672, %v1673
        %v1675 = vsel %vm926, %v1649, 0.0
        %v1676 = vadd.f32 %v1645, %v1675
        %v1677 = vrot.slane %v1676, 4
        %v1678 = vadd.f32 %v1676, %v1677
        %v1679 = vrot.slane %v1678, 2
        %v1680 = vadd.f32 %v1678, %v1679
        %v1681 = vrot.slane %v1680, 1
        %v1682 = vadd.f32 %v1680, %v1681
        %v1683 = vsel %vm926, %v1650, 0.0
        %v1684 = vadd.f32 %v1646, %v1683
        %v1685 = vrot.slane %v1684, 4
        %v1686 = vadd.f32 %v1684, %v1685
        %v1687 = vrot.slane %v1686, 2
        %v1688 = vadd.f32 %v1686, %v1687
        %v1689 = vrot.slane %v1688, 1
        %v1690 = vadd.f32 %v1688, %v1689
        %v1691 = vsel %vm926, %v1655, 0.0
        %v1692 = vadd.f32 %v1651, %v1691
        %v1693 = vrot.slane %v1692, 4
        %v1694 = vadd.f32 %v1692, %v1693
        %v1695 = vrot.slane %v1694, 2
        %v1696 = vadd.f32 %v1694, %v1695
        %v1697 = vrot.slane %v1696, 1
        %v1698 = vadd.f32 %v1696, %v1697
        %v1699 = vsel %vm926, %v1656, 0.0
        %v1700 = vadd.f32 %v1652, %v1699
        %v1701 = vrot.slane %v1700, 4
        %v1702 = vadd.f32 %v1700, %v1701
        %v1703 = vrot.slane %v1702, 2
        %v1704 = vadd.f32 %v1702, %v1703
        %v1705 = vrot.slane %v1704, 1
        %v1706 = vadd.f32 %v1704, %v1705
        %v1707 = vsel %vm926, %v1657, 0.0
        %v1708 = vadd.f32 %v1653, %v1707
        %v1709 = vrot.slane %v1708, 4
        %v1710 = vadd.f32 %v1708, %v1709
        %v1711 = vrot.slane %v1710, 2
        %v1712 = vadd.f32 %v1710, %v1711
        %v1713 = vrot.slane %v1712, 1
        %v1714 = vadd.f32 %v1712, %v1713
        %v1715 = vsel %vm926, %v1658, 0.0
        %v1716 = vadd.f32 %v1654, %v1715
        %v1717 = vrot.slane %v1716, 4
        %v1718 = vadd.f32 %v1716, %v1717
        %v1719 = vrot.slane %v1718, 2
        %v1720 = vadd.f32 %v1718, %v1719
        %v1721 = vrot.slane %v1720, 1
        %v1722 = vadd.f32 %v1720, %v1721
        %v1723 = vadd.f32 %v1323, %v1666
        %v1724 = vadd.f32 %v1324, %v1674
        %v1725 = vadd.f32 %v1325, %v1682
        %v1726 = vadd.f32 %v1326, %v1690
        %v1727 = vadd.f32 %v1331, %v1698
        %v1728 = vadd.f32 %v1332, %v1706
        %v1729 = vadd.f32 %v1333, %v1714
        %v1730 = vadd.f32 %v1334, %v1722
        %v1731 = vlog2.pop %v1538
        %v1732 = vmul.f32 %v1731, 0.6931472
        %v1733 = vlog2.pop %v1546
        %v1734 = vmul.f32 %v1733, 0.6931472
        %v1735 = vlog2.pop %v1554
        %v1736 = vmul.f32 %v1735, 0.6931472
        %v1737 = vlog2.pop %v1562
        %v1738 = vmul.f32 %v1737, 0.6931472
        %v1739 = vlog2.pop %v1570
        %v1740 = vmul.f32 %v1739, 0.6931472
        %v1741 = vlog2.pop %v1578
        %v1742 = vmul.f32 %v1741, 0.6931472
        %v1743 = vlog2.pop %v1586
        %v1744 = vmul.f32 %v1743, 0.6931472
        %v1745 = vlog2.pop %v1594
        %v1746 = vmul.f32 %v1745, 0.6931472
        %v1747 = vadd.f32 %v1426, %v1732
        %v1748 = vadd.f32 %v1434, %v1734
        %v1749 = vadd.f32 %v1442, %v1736
        %v1750 = vadd.f32 %v1450, %v1738
        %v1751 = vadd.f32 %v1458, %v1740
        %v1752 = vadd.f32 %v1466, %v1742
        %v1753 = vadd.f32 %v1474, %v1744
        %v1754 = vadd.f32 %v1482, %v1746
        %v1755 = vsub.f32 %v1747, %v1723
        %v1756 = vsub.f32 %v1748, %v1724
        %v1757 = vsub.f32 %v1749, %v1725
        %v1758 = vsub.f32 %v1750, %v1726
        %v1759 = vsub.f32 %v1751, %v1727
        %v1760 = vsub.f32 %v1752, %v1728
        %v1761 = vsub.f32 %v1753, %v1729
        %v1762 = vsub.f32 %v1754, %v1730
        %v1763 = vrcp.pop %v1538
        %v1764 = vmul.f32 1.0, %v1763
        %v1765 = vrcp.pop %v1546
        %v1766 = vmul.f32 1.0, %v1765
        %v1767 = vrcp.pop %v1554
        %v1768 = vmul.f32 1.0, %v1767
        %v1769 = vrcp.pop %v1562
        %v1770 = vmul.f32 1.0, %v1769
        %v1771 = vrcp.pop %v1570
        %v1772 = vmul.f32 1.0, %v1771
        %v1773 = vrcp.pop %v1578
        %v1774 = vmul.f32 1.0, %v1773
        %v1775 = vrcp.pop %v1586
        %v1776 = vmul.f32 1.0, %v1775
        %v1777 = vrcp.pop %v1594
        %v1778 = vmul.f32 1.0, %v1777
        %v1779 = vsub.f32 1.0, %v1764
        %v1780 = vsub.f32 1.0, %v1766
        %v1781 = vsub.f32 1.0, %v1768
        %v1782 = vsub.f32 1.0, %v1770
        %v1783 = vsub.f32 1.0, %v1772
        %v1784 = vsub.f32 1.0, %v1774
        %v1785 = vsub.f32 1.0, %v1776
        %v1786 = vsub.f32 1.0, %v1778
        %v1787 = vmul.f32 %v1779, %v1779
        %v1788 = vmul.f32 %v1780, %v1780
        %v1789 = vmul.f32 %v1781, %v1781
        %v1790 = vmul.f32 %v1782, %v1782
        %v1791 = vmul.f32 %v1783, %v1783
        %v1792 = vmul.f32 %v1784, %v1784
        %v1793 = vmul.f32 %v1785, %v1785
        %v1794 = vmul.f32 %v1786, %v1786
        %v1795 = vld [vmem:[%s582] sm:$0x1]
        %v1796 = vld [vmem:[%s582 + $0x1] sm:$0x1]
        %v1797 = vmul.f32 %v1755, %v1787
        %v1798 = vmul.f32 %v1756, %v1788
        %v1799 = vmul.f32 %v1757, %v1789
        %v1800 = vmul.f32 %v1758, %v1790
        %v1801 = vmul.f32 %v1759, %v1791
        %v1802 = vmul.f32 %v1760, %v1792
        %v1803 = vmul.f32 %v1761, %v1793
        %v1804 = vmul.f32 %v1762, %v1794
        %v1805 = vadd.f32 %v1797, %v1798
        %v1806 = vadd.f32 %v1801, %v1802
        %v1807 = vadd.f32 %v1799, %v1800
        %v1808 = vadd.f32 %v1803, %v1804
        %v1809 = vadd.f32 %v1805, %v1807
        %v1810 = vadd.f32 %v1806, %v1808
        %v1811 = vadd.f32 %v1795, %v1809
        %v1812 = vadd.f32 %v1796, %v1810
        %1813 = vst [vmem:[%s582] sm:$0x1] %v1811
        %1814 = vst [vmem:[%s582 + $0x1] sm:$0x1] %v1812
        %p1815 = scmp.lt.s32.totalorder %s25, 1
        %s1816 = scalar_select %p1815, %s25, 1
        %s1817 = smul.addr %s1816, 4
        %s1818 = smul.addr %s1817, 8
        %s1819 = scalar_lea.vmem %s3, %s1818
        %p1820 = scmp.lt.s32.totalorder %s25, 1
        %s1821 = scalar_select %p1820, %s25, 1
        %s1822 = smul.addr %s1821, 4
        %s1823 = smul.addr %s1822, 8
        %s1824 = scalar_lea.vmem %s4, %s1823
        %p1825 = scmp.lt.s32.totalorder %s25, 1
        %s1826 = scalar_select %p1825, %s25, 1
        %s1827 = smul.addr %s1826, 2
        %s1828 = scalar_lea.vmem %s5, %s1827
        %p1829 = scmp.lt.s32.totalorder %s25, 1
        %s1830 = scalar_select %p1829, %s25, 1
        %s1831 = smul.addr %s1830, 4
        %s1832 = smul.addr %s1831, 8
        %s1833 = scalar_lea.vmem %s6, %s1832
        %p1834 = scmp.lt.s32.totalorder %s25, 1
        %s1835 = scalar_select %p1834, %s25, 1
        %s1836 = smul.addr %s1835, 4
        %s1837 = smul.addr %s1836, 8
        %s1838 = scalar_lea.vmem %s7, %s1837
        %p1839 = scmp.lt.s32.totalorder %s25, 1
        %s1840 = scalar_select %p1839, %s25, 1
        %s1841 = smul.addr %s1840, 2
        %s1842 = scalar_lea.vmem %s8, %s1841
        %p1843 = scmp.lt.s32.totalorder %s25, 1
        %s1844 = scalar_select %p1843, %s25, 1
        %s1845 = smul.addr %s1844, 4
        %s1846 = smul.addr %s1845, 8
        %s1847 = scalar_lea.vmem %s9, %s1846
        // Predicated region
        $region83: #{focal_dice_loss.1} parent=69 // pred_check
          %p1848 = pneg %p141
        $region84: #{focal_dice_loss.1} parent=69 // pred_check_branch
          %1850 = sbr.rel (%p1848) target = $region86
        $region85: #{focal_dice_loss.1} parent=69 // pred_region
          _
        $region86: #{focal_dice_loss.1} parent=69 // pred_fallthru
          _
        // Predicated region
        $region87: #{focal_dice_loss.1} parent=69 // pred_check
          %p1851 = pneg %p167
        $region88: #{focal_dice_loss.1} parent=69 // pred_check_branch
          %1853 = sbr.rel (%p1851) target = $region90
        $region89: #{focal_dice_loss.1} parent=69 // pred_region
          _
        $region90: #{focal_dice_loss.1} parent=69 // pred_fallthru
          _
        // Predicated region
        $region91: #{focal_dice_loss.1} parent=69 // pred_check
          %p1854 = pneg %p193
        $region92: #{focal_dice_loss.1} parent=69 // pred_check_branch
          %1856 = sbr.rel (%p1854) target = $region94
        $region93: #{focal_dice_loss.1} parent=69 // pred_region
          _
        $region94: #{focal_dice_loss.1} parent=69 // pred_fallthru
          _
        // Predicated region
        $region95: #{focal_dice_loss.1} parent=69 // pred_check
          %p1857 = pneg %p219
        $region96: #{focal_dice_loss.1} parent=69 // pred_check_branch
          %1859 = sbr.rel (%p1857) target = $region98
        $region97: #{focal_dice_loss.1} parent=69 // pred_region
          _
        $region98: #{focal_dice_loss.1} parent=69 // pred_fallthru
          _
        // Predicated region
        $region99: #{focal_dice_loss.1} parent=69 // pred_check
          %p1860 = pneg %p245
        $region100: #{focal_dice_loss.1} parent=69 // pred_check_branch
          %1862 = sbr.rel (%p1860) target = $region102
        $region101: #{focal_dice_loss.1} parent=69 // pred_region
          _
        $region102: #{focal_dice_loss.1} parent=69 // pred_fallthru
          _
        // Predicated region
        $region103: #{focal_dice_loss.1} parent=69 // pred_check
          %p1863 = pneg %p271
        $region104: #{focal_dice_loss.1} parent=69 // pred_check_branch
          %1865 = sbr.rel (%p1863) target = $region106
        $region105: #{focal_dice_loss.1} parent=69 // pred_region
          _
        $region106: #{focal_dice_loss.1} parent=69 // pred_fallthru
          _
        // Predicated region
        $region107: #{focal_dice_loss.1} parent=69 // pred_check
          %p1866 = pneg %p297
        $region108: #{focal_dice_loss.1} parent=69 // pred_check_branch
          %1868 = sbr.rel (%p1866) target = $region110
        $region109: #{focal_dice_loss.1} parent=69 // pred_region
          _
        $region110: #{focal_dice_loss.1} parent=69 // pred_fallthru
          _
      $region70: #{focal_dice_loss.1} parent=5 // pred_fallthru
        _
      %p1869 = scmp.le.s32.totalorder 2, %s16
      // Predicated region
      $region111: #{focal_dice_loss.1} parent=5 // pred_check
        %p1870 = pneg %p1869
      $region112: #{focal_dice_loss.1} parent=5 // pred_check_branch
        %1872 = sbr.rel (%p1870) target = $region114
      $region113: #{focal_dice_loss.1} parent=5 // pred_region
        %s1873 = ssub.s32 %s16, 2
        // Predicated region
        $region115: #{focal_dice_loss.1} parent=113 // pred_check
          %p1874 = pneg %p147
        $region116: #{focal_dice_loss.1} parent=113 // pred_check_branch
          %1876 = sbr.rel (%p1874) target = $region118
        $region117: #{focal_dice_loss.1} parent=113 // pred_region
          %p1877 = scmp.lt.s32.totalorder %s27, 1
          %s1878 = scalar_select %p1877, %s27, 1
          %s1879 = smul.addr %s1878, 4
          %s1880 = smul.addr %s1879, 8
          %s1881 = scalar_lea.vmem %s3, %s1880
        $region118: #{focal_dice_loss.1} parent=113 // pred_fallthru
          _
        // Predicated region
        $region119: #{focal_dice_loss.1} parent=113 // pred_check
          %p1882 = pneg %p173
        $region120: #{focal_dice_loss.1} parent=113 // pred_check_branch
          %1884 = sbr.rel (%p1882) target = $region122
        $region121: #{focal_dice_loss.1} parent=113 // pred_region
          %p1885 = scmp.lt.s32.totalorder %s27, 1
          %s1886 = scalar_select %p1885, %s27, 1
          %s1887 = smul.addr %s1886, 4
          %s1888 = smul.addr %s1887, 8
          %s1889 = scalar_lea.vmem %s4, %s1888
        $region122: #{focal_dice_loss.1} parent=113 // pred_fallthru
          _
        // Predicated region
        $region123: #{focal_dice_loss.1} parent=113 // pred_check
          %p1890 = pneg %p199
        $region124: #{focal_dice_loss.1} parent=113 // pred_check_branch
          %1892 = sbr.rel (%p1890) target = $region126
        $region125: #{focal_dice_loss.1} parent=113 // pred_region
          %p1893 = scmp.lt.s32.totalorder %s27, 1
          %s1894 = scalar_select %p1893, %s27, 1
          %s1895 = smul.addr %s1894, 2
          %s1896 = scalar_lea.vmem %s5, %s1895
        $region126: #{focal_dice_loss.1} parent=113 // pred_fallthru
          _
        // Predicated region
        $region127: #{focal_dice_loss.1} parent=113 // pred_check
          %p1897 = pneg %p225
        $region128: #{focal_dice_loss.1} parent=113 // pred_check_branch
          %1899 = sbr.rel (%p1897) target = $region130
        $region129: #{focal_dice_loss.1} parent=113 // pred_region
          %p1900 = scmp.lt.s32.totalorder %s27, 1
          %s1901 = scalar_select %p1900, %s27, 1
          %s1902 = smul.addr %s1901, 4
          %s1903 = smul.addr %s1902, 8
          %s1904 = scalar_lea.vmem %s6, %s1903
        $region130: #{focal_dice_loss.1} parent=113 // pred_fallthru
          _
        // Predicated region
        $region131: #{focal_dice_loss.1} parent=113 // pred_check
          %p1905 = pneg %p251
        $region132: #{focal_dice_loss.1} parent=113 // pred_check_branch
          %1907 = sbr.rel (%p1905) target = $region134
        $region133: #{focal_dice_loss.1} parent=113 // pred_region
          %p1908 = scmp.lt.s32.totalorder %s27, 1
          %s1909 = scalar_select %p1908, %s27, 1
          %s1910 = smul.addr %s1909, 4
          %s1911 = smul.addr %s1910, 8
          %s1912 = scalar_lea.vmem %s7, %s1911
        $region134: #{focal_dice_loss.1} parent=113 // pred_fallthru
          _
        // Predicated region
        $region135: #{focal_dice_loss.1} parent=113 // pred_check
          %p1913 = pneg %p277
        $region136: #{focal_dice_loss.1} parent=113 // pred_check_branch
          %1915 = sbr.rel (%p1913) target = $region138
        $region137: #{focal_dice_loss.1} parent=113 // pred_region
          %p1916 = scmp.lt.s32.totalorder %s27, 1
          %s1917 = scalar_select %p1916, %s27, 1
          %s1918 = smul.addr %s1917, 2
          %s1919 = scalar_lea.vmem %s8, %s1918
        $region138: #{focal_dice_loss.1} parent=113 // pred_fallthru
          _
        // Predicated region
        $region139: #{focal_dice_loss.1} parent=113 // pred_check
          %p1920 = pneg %p303
        $region140: #{focal_dice_loss.1} parent=113 // pred_check_branch
          %1922 = sbr.rel (%p1920) target = $region142
        $region141: #{focal_dice_loss.1} parent=113 // pred_region
          %p1923 = scmp.lt.s32.totalorder %s27, 1
          %s1924 = scalar_select %p1923, %s27, 1
          %s1925 = smul.addr %s1924, 4
          %s1926 = smul.addr %s1925, 8
          %s1927 = scalar_lea.vmem %s9, %s1926
        $region142: #{focal_dice_loss.1} parent=113 // pred_fallthru
          _
      $region114: #{focal_dice_loss.1} parent=5 // pred_fallthru
        _
    $region6: #{focal_dice_loss.1} parent=1 // loop_footer
      %s20 = sadd.s32 1, %s16
    $region7: #{focal_dice_loss.1} parent=1 // loop_footer_branch
      %15 = sbr.rel target = $region3
    $region8: #{focal_dice_loss.1} parent=1 // loop_exit
      _

</llo_original>
